<compile_context>
chip_gen: v5e
topology: v5e:2x2
jax: 0.10.0
libtpu: 0.0.40
codegen_flags: <defaults>
</compile_context>

<pallas_src>
import functools

import jax
import jax.numpy as jnp
from jax.experimental import pallas as pl
from jax.experimental.pallas import tpu as pltpu


def _layernorm_kernel(x_ref, g_ref, b_ref, o_ref, *, eps):
    x = x_ref[...].astype(jnp.float32)                    # (T, D)
    mean = jnp.mean(x, axis=-1, keepdims=True)            # (T, 1)  XLU reduce
    xc = x - mean
    var = jnp.mean(xc * xc, axis=-1, keepdims=True)       # (T, 1)
    inv = jax.lax.rsqrt(var + eps)                        # EUP rsqrt (free slot)
    y = xc * inv * g_ref[...] + b_ref[...]                 # (T, D)
    o_ref[...] = y.astype(o_ref.dtype)


def _rows_per_block(rows, d, itemsize, vmem_budget_bytes=8 * 1024 * 1024):
    # double-buffered input block + double-buffered output block of (T, D)
    per_row = 4 * d * max(int(itemsize), 4)
    t = min(rows, max(8, vmem_budget_bytes // per_row))
    t = max(8, (t // 8) * 8)                               # sublane multiple
    return t


def layer_norm(x, gamma, beta, *, eps=1e-5):
    """LayerNorm over the last dim of x (arbitrary leading dims) via Pallas."""
    orig_shape = x.shape
    d = orig_shape[-1]
    rows = 1
    for s in orig_shape[:-1]:
        rows *= s
    x2 = x.reshape(rows, d)                                # leading-dim merge only

    t = _rows_per_block(rows, d, x.dtype.itemsize)
    rows_pad = pl.cdiv(rows, t) * t
    if rows_pad != rows:
        x2 = jnp.pad(x2, ((0, rows_pad - rows), (0, 0)))

    g = gamma.reshape(1, d).astype(jnp.float32)
    b = beta.reshape(1, d).astype(jnp.float32)

    out = pl.pallas_call(
        functools.partial(_layernorm_kernel, eps=eps),
        out_shape=jax.ShapeDtypeStruct((rows_pad, d), x.dtype),
        grid_spec=pltpu.PrefetchScalarGridSpec(
            num_scalar_prefetch=0,
            grid=(rows_pad // t,),
            in_specs=[
                pl.BlockSpec((t, d), lambda i: (i, 0)),    # activations, streamed
                pl.BlockSpec((1, d), lambda i: (0, 0)),    # gamma, VMEM-resident
                pl.BlockSpec((1, d), lambda i: (0, 0)),    # beta,  VMEM-resident
            ],
            out_specs=pl.BlockSpec((t, d), lambda i: (i, 0)),
        ),
        compiler_params=pltpu.CompilerParams(
            dimension_semantics=("parallel",),
            vmem_limit_bytes=32 * 1024 * 1024,             # fits v7x scoped default
        ),
    )(x2, g, b)

    if rows_pad != rows:
        out = out[:rows]
    return out.reshape(orig_shape)


def pre_norm(x, gamma, beta, fn=None, *, eps=1e-5):
    """PreNorm.forward: fn(LayerNorm(x))."""
    y = layer_norm(x, gamma, beta, eps=eps)
    # TODO(synk): `fn` is an arbitrary wrapped nn.Module; it is applied here as
    # a plain-JAX callable on the kernel output (only LayerNorm is kernelized).
    return fn(y) if fn is not None else y


def _reference(x, gamma, beta, fn=None, *, eps=1e-5):
    """Pure-JAX reference of the PyTorch forward."""
    mean = jnp.mean(x, axis=-1, keepdims=True)
    var = jnp.mean((x - mean) ** 2, axis=-1, keepdims=True)
    y = (x - mean) * jax.lax.rsqrt(var + eps) * gamma + beta
    return fn(y) if fn is not None else y


if __name__ == "__main__":
    B, N, D = 2, 256, 128          # token layout (batch, seq, dim); D lane-dense
    key = jax.random.PRNGKey(0)
    kx, kg, kb, kw, kb2 = jax.random.split(key, 5)
    x = jax.random.normal(kx, (B, N, D), jnp.float32)
    gamma = 1.0 + 0.1 * jax.random.normal(kg, (D,), jnp.float32)
    beta = 0.1 * jax.random.normal(kb, (D,), jnp.float32)

    # Example wrapped `fn` (what PreNorm wraps in the MobileViT-v2 transformer
    # block is a FeedForward / attention module) as a plain-JAX callable.
    w_fn = 0.05 * jax.random.normal(kw, (D, D), jnp.float32)
    b_fn = 0.05 * jax.random.normal(kb2, (D,), jnp.float32)
    fn = lambda y: jax.nn.gelu(y @ w_fn + b_fn)

    out = pre_norm(x, gamma, beta, fn)
    out = jax.block_until_ready(out)

    ref = _reference(x, gamma, beta, fn)
    assert out.shape == (B, N, D)
    assert jnp.allclose(out, ref, atol=1e-5, rtol=1e-5)
    print("KERNEL_OK")
</pallas_src>

<mosaic_0001>
module attributes {stable_mosaic.version = 11 : i64} {
  func.func @_layernorm_kernel(%arg0: i32, %arg1: memref<512x128xf32, #tpu.memory_space<vmem>>, %arg2: memref<1x128xf32, #tpu.memory_space<vmem>>, %arg3: memref<1x128xf32, #tpu.memory_space<vmem>>, %arg4: memref<512x128xf32, #tpu.memory_space<vmem>>) attributes {dimension_semantics = [#tpu.dimension_semantics<parallel>], iteration_bounds = array<i64: 1>, scalar_prefetch = 0 : i64, scratch_operands = 0 : i64, tpu.core_type = #tpu.core_type<tc>, window_params = [{transform_indices = @transform_0, window_bounds = array<i64: 512, 128>}, {pipeline_mode = #tpu.pipeline_mode<synchronous>, transform_indices = @transform_1, window_bounds = array<i64: 1, 128>}, {pipeline_mode = #tpu.pipeline_mode<synchronous>, transform_indices = @transform_2, window_bounds = array<i64: 1, 128>}, {transform_indices = @transform_3, window_bounds = array<i64: 512, 128>}]} {
    %c0 = arith.constant 0 : index
    %c0_0 = arith.constant 0 : index
    %0 = vector.load %arg1[%c0, %c0_0] : memref<512x128xf32, #tpu.memory_space<vmem>>, vector<512x128xf32>
    %cst = arith.constant dense<0.000000e+00> : vector<512xf32>
    %1 = vector.multi_reduction <add>, %0, %cst [1] : vector<512x128xf32> to vector<512xf32>
    %2 = vector.shape_cast %1 : vector<512xf32> to vector<512x1xf32>
    %cst_1 = arith.constant 1.280000e+02 : f32
    %3 = vector.broadcast %cst_1 : f32 to vector<512x1xf32>
    %4 = arith.divf %2, %3 : vector<512x1xf32>
    %5 = vector.broadcast %4 : vector<512x1xf32> to vector<512x128xf32>
    %6 = arith.subf %0, %5 : vector<512x128xf32>
    %7 = arith.mulf %6, %6 : vector<512x128xf32>
    %cst_2 = arith.constant dense<0.000000e+00> : vector<512xf32>
    %8 = vector.multi_reduction <add>, %7, %cst_2 [1] : vector<512x128xf32> to vector<512xf32>
    %9 = vector.shape_cast %8 : vector<512xf32> to vector<512x1xf32>
    %cst_3 = arith.constant 1.280000e+02 : f32
    %10 = vector.broadcast %cst_3 : f32 to vector<512x1xf32>
    %11 = arith.divf %9, %10 : vector<512x1xf32>
    %cst_4 = arith.constant 9.99999974E-6 : f32
    %12 = vector.broadcast %cst_4 : f32 to vector<512x1xf32>
    %13 = arith.addf %11, %12 : vector<512x1xf32>
    %14 = math.rsqrt %13 : vector<512x1xf32>
    %15 = vector.broadcast %14 : vector<512x1xf32> to vector<512x128xf32>
    %16 = arith.mulf %6, %15 : vector<512x128xf32>
    %c0_5 = arith.constant 0 : index
    %c0_6 = arith.constant 0 : index
    %17 = vector.load %arg2[%c0_5, %c0_6] : memref<1x128xf32, #tpu.memory_space<vmem>>, vector<1x128xf32>
    %18 = vector.broadcast %17 : vector<1x128xf32> to vector<512x128xf32>
    %19 = arith.mulf %16, %18 : vector<512x128xf32>
    %c0_7 = arith.constant 0 : index
    %c0_8 = arith.constant 0 : index
    %20 = vector.load %arg3[%c0_7, %c0_8] : memref<1x128xf32, #tpu.memory_space<vmem>>, vector<1x128xf32>
    %21 = vector.broadcast %20 : vector<1x128xf32> to vector<512x128xf32>
    %22 = arith.addf %19, %21 : vector<512x128xf32>
    %c0_9 = arith.constant 0 : index
    %c0_10 = arith.constant 0 : index
    %23 = vector.load %arg4[%c0_9, %c0_10] : memref<512x128xf32, #tpu.memory_space<vmem>>, vector<512x128xf32>
    tpu.vector_store %arg4[%c0_9, %c0_10], %22 {strides = array<i32>} : memref<512x128xf32, #tpu.memory_space<vmem>>, vector<512x128xf32>,
    return
  }
  func.func @transform_0(%arg0: i32) -> (i32, i32) {
    %c0_i32 = arith.constant 0 : i32
    %c0_i32_0 = arith.constant 0 : i32
    return %arg0, %c0_i32 : i32, i32
  }
  func.func @transform_1(%arg0: i32) -> (i32, i32) {
    %c0_i32 = arith.constant 0 : i32
    %c0_i32_0 = arith.constant 0 : i32
    %c0_i32_1 = arith.constant 0 : i32
    return %c0_i32, %c0_i32_0 : i32, i32
  }
  func.func @transform_2(%arg0: i32) -> (i32, i32) {
    %c0_i32 = arith.constant 0 : i32
    %c0_i32_0 = arith.constant 0 : i32
    %c0_i32_1 = arith.constant 0 : i32
    return %c0_i32, %c0_i32_0 : i32, i32
  }
  func.func @transform_3(%arg0: i32) -> (i32, i32) {
    %c0_i32 = arith.constant 0 : i32
    %c0_i32_0 = arith.constant 0 : i32
    return %arg0, %c0_i32 : i32, i32
  }
}

</mosaic_0001>

<llo_original>
// kernel: tpu_custom_call.1
$region0: #{tpu_custom_call.1}
  #allocation0 [shape = 'u32[]', space=smem, size = 0x4, offset = 0x4, fixed_abs, tag = 'smem constant byte address 0x4 - core index']
  #allocation1 [shape = 'u32[72,128]{1,0:T(1,128)}', space=vmem, size = 0x9000, scoped, tag = 'internal scratch']
  %s0 = inlined_call_operand.hbm [shape: f32[512,128], index: 0, kind: input, shape index: {}]
  %s1 = inlined_call_operand.hbm [shape: f32[1,128], index: 1, kind: input, shape index: {}]
  %s2 = inlined_call_operand.vmem [shape: f32[1,128], index: 2, kind: input, shape index: {}]
  %s3 = inlined_call_operand.hbm [shape: f32[512,128], index: 3, kind: output, shape index: {}]
  %s4 = sld [smem:[#allocation0]]
  $region30: #{tpu_custom_call.1} parent=0
    _
  %s6 = ssub.s32 1, %s4
  %s7 = scalar_select 0, %s6, %s4
  $region1: #{tpu_custom_call.1} parent=0
    #allocation2 [shape = 'u8[262144]{0}', space=vmem, size = 0x40000, scoped, tag = 'input window, operand 0, single buffered']
    #allocation3 [shape = 's32[1]{0}', space=sflag, size = 0x4, scoped, tag = 'scoped memory for tpu_custom_call.1']
    #allocation4 [shape = 's32[1]{0}', space=sflag, size = 0x4, scoped, tag = 'scoped memory for tpu_custom_call.1']
    #allocation5 [shape = 'u8[512]{0}', space=vmem, size = 0x400, scoped, tag = 'input window, operand 1, single buffered']
    #allocation6 [shape = 's32[1]{0}', space=sflag, size = 0x4, scoped, tag = 'scoped memory for tpu_custom_call.1']
    #allocation7 [shape = 'u8[262144]{0}', space=vmem, size = 0x40000, scoped, tag = 'output window, operand 0, single buffered']
    %8 = vsyncpa [#allocation3], 0
    %9 = vsyncpa [#allocation6], 0
    %10 = vsyncpa [#allocation4], 0
    // Predicated region
    $region2: #{tpu_custom_call.1} parent=1 // pred_check
      _
    $region3: #{tpu_custom_call.1} parent=1 // pred_check_branch
      %12 = sbr.rel (0) target = $region5
    $region4: #{tpu_custom_call.1} parent=1 // pred_region
      %14 = vsyncadd [#allocation3], 0
      %s15 = sshll.u32 %s0, 4
      %s16 = int_to_ptr.hbm [resolvable:$true] %s15
      %s17 = sshll.u32 [#allocation2], 4
      %s18 = int_to_ptr.vmem [resolvable:$true] %s17
      %23 = dma.hbm_to_vmem [thread:$0]  %s16, 8192, %s18, [#allocation3], 128, 128, 8
    $region5: #{tpu_custom_call.1} parent=1 // pred_fallthru
      _
    // Predicated region
    $region6: #{tpu_custom_call.1} parent=1 // pred_check
      _
    $region7: #{tpu_custom_call.1} parent=1 // pred_check_branch
      %25 = sbr.rel (0) target = $region9
    $region8: #{tpu_custom_call.1} parent=1 // pred_region
      %27 = vsyncadd [#allocation6], 0
      %s29 = sshll.u32 %s1, 4
      %s30 = int_to_ptr.hbm [resolvable:$true] %s29
      %s31 = sshll.u32 [#allocation5], 4
      %s32 = int_to_ptr.vmem [resolvable:$true] %s31
      %34 = dma.hbm_to_vmem [thread:$0]  %s30, 16, %s32, [#allocation6]
    $region9: #{tpu_custom_call.1} parent=1 // pred_fallthru
      _
    // Predicated region
    $region10: #{tpu_custom_call.1} parent=1 // pred_check
      _
    $region11: #{tpu_custom_call.1} parent=1 // pred_check_branch
      %36 = sbr.rel (0) target = $region13
    $region12: #{tpu_custom_call.1} parent=1 // pred_region
      _
    $region13: #{tpu_custom_call.1} parent=1 // pred_fallthru
      _
    // Predicated region
    $region14: #{tpu_custom_call.1} parent=1 // pred_check
      _
    $region15: #{tpu_custom_call.1} parent=1 // pred_check_branch
      %38 = sbr.rel (0) target = $region17
    $region16: #{tpu_custom_call.1} parent=1 // pred_region
      %40 = dma.done [#allocation3], 8192
    $region17: #{tpu_custom_call.1} parent=1 // pred_fallthru
      _
    // Predicated region
    $region18: #{tpu_custom_call.1} parent=1 // pred_check
      _
    $region19: #{tpu_custom_call.1} parent=1 // pred_check_branch
      %42 = sbr.rel (0) target = $region21
    $region20: #{tpu_custom_call.1} parent=1 // pred_region
      %44 = dma.done [#allocation6], 16
    $region21: #{tpu_custom_call.1} parent=1 // pred_fallthru
      _
    %v45 = vld [vmem:[#allocation2] sm:$0xff]
    %v46 = vld [vmem:[#allocation2 + $0x8] sm:$0xff]
    %v47 = vld [vmem:[#allocation2 + $0x10] sm:$0xff]
    %v48 = vld [vmem:[#allocation2 + $0x18] sm:$0xff]
    %v49 = vld [vmem:[#allocation2 + $0x20] sm:$0xff]
    %v50 = vld [vmem:[#allocation2 + $0x28] sm:$0xff]
    %v51 = vld [vmem:[#allocation2 + $0x30] sm:$0xff]
    %v52 = vld [vmem:[#allocation2 + $0x38] sm:$0xff]
    %v53 = vld [vmem:[#allocation2 + $0x40] sm:$0xff]
    %v54 = vld [vmem:[#allocation2 + $0x48] sm:$0xff]
    %v55 = vld [vmem:[#allocation2 + $0x50] sm:$0xff]
    %v56 = vld [vmem:[#allocation2 + $0x58] sm:$0xff]
    %v57 = vld [vmem:[#allocation2 + $0x60] sm:$0xff]
    %v58 = vld [vmem:[#allocation2 + $0x68] sm:$0xff]
    %v59 = vld [vmem:[#allocation2 + $0x70] sm:$0xff]
    %v60 = vld [vmem:[#allocation2 + $0x78] sm:$0xff]
    %v61 = vld [vmem:[#allocation2 + $0x80] sm:$0xff]
    %v62 = vld [vmem:[#allocation2 + $0x88] sm:$0xff]
    %v63 = vld [vmem:[#allocation2 + $0x90] sm:$0xff]
    %v64 = vld [vmem:[#allocation2 + $0x98] sm:$0xff]
    %v65 = vld [vmem:[#allocation2 + $0xa0] sm:$0xff]
    %v66 = vld [vmem:[#allocation2 + $0xa8] sm:$0xff]
    %v67 = vld [vmem:[#allocation2 + $0xb0] sm:$0xff]
    %v68 = vld [vmem:[#allocation2 + $0xb8] sm:$0xff]
    %v69 = vld [vmem:[#allocation2 + $0xc0] sm:$0xff]
    %v70 = vld [vmem:[#allocation2 + $0xc8] sm:$0xff]
    %v71 = vld [vmem:[#allocation2 + $0xd0] sm:$0xff]
    %v72 = vld [vmem:[#allocation2 + $0xd8] sm:$0xff]
    %v73 = vld [vmem:[#allocation2 + $0xe0] sm:$0xff]
    %v74 = vld [vmem:[#allocation2 + $0xe8] sm:$0xff]
    %v75 = vld [vmem:[#allocation2 + $0xf0] sm:$0xff]
    %v76 = vld [vmem:[#allocation2 + $0xf8] sm:$0xff]
    %v77 = vld [vmem:[#allocation2 + $0x100] sm:$0xff]
    %v78 = vld [vmem:[#allocation2 + $0x108] sm:$0xff]
    %v79 = vld [vmem:[#allocation2 + $0x110] sm:$0xff]
    %v80 = vld [vmem:[#allocation2 + $0x118] sm:$0xff]
    %v81 = vld [vmem:[#allocation2 + $0x120] sm:$0xff]
    %v82 = vld [vmem:[#allocation2 + $0x128] sm:$0xff]
    %v83 = vld [vmem:[#allocation2 + $0x130] sm:$0xff]
    %v84 = vld [vmem:[#allocation2 + $0x138] sm:$0xff]
    %v85 = vld [vmem:[#allocation2 + $0x140] sm:$0xff]
    %v86 = vld [vmem:[#allocation2 + $0x148] sm:$0xff]
    %v87 = vld [vmem:[#allocation2 + $0x150] sm:$0xff]
    %v88 = vld [vmem:[#allocation2 + $0x158] sm:$0xff]
    %v89 = vld [vmem:[#allocation2 + $0x160] sm:$0xff]
    %v90 = vld [vmem:[#allocation2 + $0x168] sm:$0xff]
    %v91 = vld [vmem:[#allocation2 + $0x170] sm:$0xff]
    %v92 = vld [vmem:[#allocation2 + $0x178] sm:$0xff]
    %v93 = vld [vmem:[#allocation2 + $0x180] sm:$0xff]
    %v94 = vld [vmem:[#allocation2 + $0x188] sm:$0xff]
    %v95 = vld [vmem:[#allocation2 + $0x190] sm:$0xff]
    %v96 = vld [vmem:[#allocation2 + $0x198] sm:$0xff]
    %v97 = vld [vmem:[#allocation2 + $0x1a0] sm:$0xff]
    %v98 = vld [vmem:[#allocation2 + $0x1a8] sm:$0xff]
    %v99 = vld [vmem:[#allocation2 + $0x1b0] sm:$0xff]
    %v100 = vld [vmem:[#allocation2 + $0x1b8] sm:$0xff]
    %v101 = vld [vmem:[#allocation2 + $0x1c0] sm:$0xff]
    %v102 = vld [vmem:[#allocation2 + $0x1c8] sm:$0xff]
    %v103 = vld [vmem:[#allocation2 + $0x1d0] sm:$0xff]
    %v104 = vld [vmem:[#allocation2 + $0x1d8] sm:$0xff]
    %v105 = vld [vmem:[#allocation2 + $0x1e0] sm:$0xff]
    %v106 = vld [vmem:[#allocation2 + $0x1e8] sm:$0xff]
    %v107 = vld [vmem:[#allocation2 + $0x1f0] sm:$0xff]
    %v108 = vld [vmem:[#allocation2 + $0x1f8] sm:$0xff]
    %109 = vadd.xlane.f32.xlu0 %v45
    %v110 = vpop.xlane.xlu0 %109
    %111 = vadd.xlane.f32.xlu0 %v46
    %v112 = vpop.xlane.xlu0 %111
    %113 = vadd.xlane.f32.xlu0 %v47
    %v114 = vpop.xlane.xlu0 %113
    %115 = vadd.xlane.f32.xlu0 %v48
    %v116 = vpop.xlane.xlu0 %115
    %117 = vadd.xlane.f32.xlu0 %v49
    %v118 = vpop.xlane.xlu0 %117
    %119 = vadd.xlane.f32.xlu0 %v50
    %v120 = vpop.xlane.xlu0 %119
    %121 = vadd.xlane.f32.xlu0 %v51
    %v122 = vpop.xlane.xlu0 %121
    %123 = vadd.xlane.f32.xlu0 %v52
    %v124 = vpop.xlane.xlu0 %123
    %125 = vadd.xlane.f32.xlu0 %v53
    %v126 = vpop.xlane.xlu0 %125
    %127 = vadd.xlane.f32.xlu0 %v54
    %v128 = vpop.xlane.xlu0 %127
    %129 = vadd.xlane.f32.xlu0 %v55
    %v130 = vpop.xlane.xlu0 %129
    %131 = vadd.xlane.f32.xlu0 %v56
    %v132 = vpop.xlane.xlu0 %131
    %133 = vadd.xlane.f32.xlu0 %v57
    %v134 = vpop.xlane.xlu0 %133
    %135 = vadd.xlane.f32.xlu0 %v58
    %v136 = vpop.xlane.xlu0 %135
    %137 = vadd.xlane.f32.xlu0 %v59
    %v138 = vpop.xlane.xlu0 %137
    %139 = vadd.xlane.f32.xlu0 %v60
    %v140 = vpop.xlane.xlu0 %139
    %141 = vadd.xlane.f32.xlu0 %v61
    %v142 = vpop.xlane.xlu0 %141
    %143 = vadd.xlane.f32.xlu0 %v62
    %v144 = vpop.xlane.xlu0 %143
    %145 = vadd.xlane.f32.xlu0 %v63
    %v146 = vpop.xlane.xlu0 %145
    %147 = vadd.xlane.f32.xlu0 %v64
    %v148 = vpop.xlane.xlu0 %147
    %149 = vadd.xlane.f32.xlu0 %v65
    %v150 = vpop.xlane.xlu0 %149
    %151 = vadd.xlane.f32.xlu0 %v66
    %v152 = vpop.xlane.xlu0 %151
    %153 = vadd.xlane.f32.xlu0 %v67
    %v154 = vpop.xlane.xlu0 %153
    %155 = vadd.xlane.f32.xlu0 %v68
    %v156 = vpop.xlane.xlu0 %155
    %157 = vadd.xlane.f32.xlu0 %v69
    %v158 = vpop.xlane.xlu0 %157
    %159 = vadd.xlane.f32.xlu0 %v70
    %v160 = vpop.xlane.xlu0 %159
    %161 = vadd.xlane.f32.xlu0 %v71
    %v162 = vpop.xlane.xlu0 %161
    %163 = vadd.xlane.f32.xlu0 %v72
    %v164 = vpop.xlane.xlu0 %163
    %165 = vadd.xlane.f32.xlu0 %v73
    %v166 = vpop.xlane.xlu0 %165
    %167 = vadd.xlane.f32.xlu0 %v74
    %v168 = vpop.xlane.xlu0 %167
    %169 = vadd.xlane.f32.xlu0 %v75
    %v170 = vpop.xlane.xlu0 %169
    %171 = vadd.xlane.f32.xlu0 %v76
    %v172 = vpop.xlane.xlu0 %171
    %173 = vadd.xlane.f32.xlu0 %v77
    %v174 = vpop.xlane.xlu0 %173
    %175 = vadd.xlane.f32.xlu0 %v78
    %v176 = vpop.xlane.xlu0 %175
    %177 = vadd.xlane.f32.xlu0 %v79
    %v178 = vpop.xlane.xlu0 %177
    %179 = vadd.xlane.f32.xlu0 %v80
    %v180 = vpop.xlane.xlu0 %179
    %181 = vadd.xlane.f32.xlu0 %v81
    %v182 = vpop.xlane.xlu0 %181
    %183 = vadd.xlane.f32.xlu0 %v82
    %v184 = vpop.xlane.xlu0 %183
    %185 = vadd.xlane.f32.xlu0 %v83
    %v186 = vpop.xlane.xlu0 %185
    %187 = vadd.xlane.f32.xlu0 %v84
    %v188 = vpop.xlane.xlu0 %187
    %189 = vadd.xlane.f32.xlu0 %v85
    %v190 = vpop.xlane.xlu0 %189
    %191 = vadd.xlane.f32.xlu0 %v86
    %v192 = vpop.xlane.xlu0 %191
    %193 = vadd.xlane.f32.xlu0 %v87
    %v194 = vpop.xlane.xlu0 %193
    %195 = vadd.xlane.f32.xlu0 %v88
    %v196 = vpop.xlane.xlu0 %195
    %197 = vadd.xlane.f32.xlu0 %v89
    %v198 = vpop.xlane.xlu0 %197
    %199 = vadd.xlane.f32.xlu0 %v90
    %v200 = vpop.xlane.xlu0 %199
    %201 = vadd.xlane.f32.xlu0 %v91
    %v202 = vpop.xlane.xlu0 %201
    %203 = vadd.xlane.f32.xlu0 %v92
    %v204 = vpop.xlane.xlu0 %203
    %205 = vadd.xlane.f32.xlu0 %v93
    %v206 = vpop.xlane.xlu0 %205
    %207 = vadd.xlane.f32.xlu0 %v94
    %v208 = vpop.xlane.xlu0 %207
    %209 = vadd.xlane.f32.xlu0 %v95
    %v210 = vpop.xlane.xlu0 %209
    %211 = vadd.xlane.f32.xlu0 %v96
    %v212 = vpop.xlane.xlu0 %211
    %213 = vadd.xlane.f32.xlu0 %v97
    %v214 = vpop.xlane.xlu0 %213
    %215 = vadd.xlane.f32.xlu0 %v98
    %v216 = vpop.xlane.xlu0 %215
    %217 = vadd.xlane.f32.xlu0 %v99
    %v218 = vpop.xlane.xlu0 %217
    %219 = vadd.xlane.f32.xlu0 %v100
    %v220 = vpop.xlane.xlu0 %219
    %221 = vadd.xlane.f32.xlu0 %v101
    %v222 = vpop.xlane.xlu0 %221
    %223 = vadd.xlane.f32.xlu0 %v102
    %v224 = vpop.xlane.xlu0 %223
    %225 = vadd.xlane.f32.xlu0 %v103
    %v226 = vpop.xlane.xlu0 %225
    %227 = vadd.xlane.f32.xlu0 %v104
    %v228 = vpop.xlane.xlu0 %227
    %229 = vadd.xlane.f32.xlu0 %v105
    %v230 = vpop.xlane.xlu0 %229
    %231 = vadd.xlane.f32.xlu0 %v106
    %v232 = vpop.xlane.xlu0 %231
    %233 = vadd.xlane.f32.xlu0 %v107
    %v234 = vpop.xlane.xlu0 %233
    %235 = vadd.xlane.f32.xlu0 %v108
    %v236 = vpop.xlane.xlu0 %235
    %v237 = vrcp.pop 128.0
    %v238 = vmul.f32 128.0, %v237
    %v239 = vsub.f32 1.0, %v238
    %v240 = vmul.f32 %v237, %v239
    %v241 = vadd.f32 %v237, %v240
    %vm242 = vweird.f32 %v237
    %v243 = vsel %vm242, %v237, %v241
    %v244 = vmul.f32 %v110, %v243
    %v245 = vmul.f32 %v112, %v243
    %v246 = vmul.f32 %v114, %v243
    %v247 = vmul.f32 %v116, %v243
    %v248 = vmul.f32 %v118, %v243
    %v249 = vmul.f32 %v120, %v243
    %v250 = vmul.f32 %v122, %v243
    %v251 = vmul.f32 %v124, %v243
    %v252 = vmul.f32 %v126, %v243
    %v253 = vmul.f32 %v128, %v243
    %v254 = vmul.f32 %v130, %v243
    %v255 = vmul.f32 %v132, %v243
    %v256 = vmul.f32 %v134, %v243
    %v257 = vmul.f32 %v136, %v243
    %v258 = vmul.f32 %v138, %v243
    %v259 = vmul.f32 %v140, %v243
    %v260 = vmul.f32 %v142, %v243
    %v261 = vmul.f32 %v144, %v243
    %v262 = vmul.f32 %v146, %v243
    %v263 = vmul.f32 %v148, %v243
    %v264 = vmul.f32 %v150, %v243
    %v265 = vmul.f32 %v152, %v243
    %v266 = vmul.f32 %v154, %v243
    %v267 = vmul.f32 %v156, %v243
    %v268 = vmul.f32 %v158, %v243
    %v269 = vmul.f32 %v160, %v243
    %v270 = vmul.f32 %v162, %v243
    %v271 = vmul.f32 %v164, %v243
    %v272 = vmul.f32 %v166, %v243
    %v273 = vmul.f32 %v168, %v243
    %v274 = vmul.f32 %v170, %v243
    %v275 = vmul.f32 %v172, %v243
    %v276 = vmul.f32 %v174, %v243
    %v277 = vmul.f32 %v176, %v243
    %v278 = vmul.f32 %v178, %v243
    %v279 = vmul.f32 %v180, %v243
    %v280 = vmul.f32 %v182, %v243
    %v281 = vmul.f32 %v184, %v243
    %v282 = vmul.f32 %v186, %v243
    %v283 = vmul.f32 %v188, %v243
    %v284 = vmul.f32 %v190, %v243
    %v285 = vmul.f32 %v192, %v243
    %v286 = vmul.f32 %v194, %v243
    %v287 = vmul.f32 %v196, %v243
    %v288 = vmul.f32 %v198, %v243
    %v289 = vmul.f32 %v200, %v243
    %v290 = vmul.f32 %v202, %v243
    %v291 = vmul.f32 %v204, %v243
    %v292 = vmul.f32 %v206, %v243
    %v293 = vmul.f32 %v208, %v243
    %v294 = vmul.f32 %v210, %v243
    %v295 = vmul.f32 %v212, %v243
    %v296 = vmul.f32 %v214, %v243
    %v297 = vmul.f32 %v216, %v243
    %v298 = vmul.f32 %v218, %v243
    %v299 = vmul.f32 %v220, %v243
    %v300 = vmul.f32 %v222, %v243
    %v301 = vmul.f32 %v224, %v243
    %v302 = vmul.f32 %v226, %v243
    %v303 = vmul.f32 %v228, %v243
    %v304 = vmul.f32 %v230, %v243
    %v305 = vmul.f32 %v232, %v243
    %v306 = vmul.f32 %v234, %v243
    %v307 = vmul.f32 %v236, %v243
    %v308 = vsub.f32 %v45, %v244
    %v309 = vsub.f32 %v46, %v245
    %v310 = vsub.f32 %v47, %v246
    %v311 = vsub.f32 %v48, %v247
    %v312 = vsub.f32 %v49, %v248
    %v313 = vsub.f32 %v50, %v249
    %v314 = vsub.f32 %v51, %v250
    %v315 = vsub.f32 %v52, %v251
    %v316 = vsub.f32 %v53, %v252
    %v317 = vsub.f32 %v54, %v253
    %v318 = vsub.f32 %v55, %v254
    %v319 = vsub.f32 %v56, %v255
    %v320 = vsub.f32 %v57, %v256
    %v321 = vsub.f32 %v58, %v257
    %v322 = vsub.f32 %v59, %v258
    %v323 = vsub.f32 %v60, %v259
    %v324 = vsub.f32 %v61, %v260
    %v325 = vsub.f32 %v62, %v261
    %v326 = vsub.f32 %v63, %v262
    %v327 = vsub.f32 %v64, %v263
    %v328 = vsub.f32 %v65, %v264
    %v329 = vsub.f32 %v66, %v265
    %v330 = vsub.f32 %v67, %v266
    %v331 = vsub.f32 %v68, %v267
    %v332 = vsub.f32 %v69, %v268
    %v333 = vsub.f32 %v70, %v269
    %v334 = vsub.f32 %v71, %v270
    %v335 = vsub.f32 %v72, %v271
    %v336 = vsub.f32 %v73, %v272
    %v337 = vsub.f32 %v74, %v273
    %v338 = vsub.f32 %v75, %v274
    %v339 = vsub.f32 %v76, %v275
    %v340 = vsub.f32 %v77, %v276
    %v341 = vsub.f32 %v78, %v277
    %v342 = vsub.f32 %v79, %v278
    %v343 = vsub.f32 %v80, %v279
    %v344 = vsub.f32 %v81, %v280
    %v345 = vsub.f32 %v82, %v281
    %v346 = vsub.f32 %v83, %v282
    %v347 = vsub.f32 %v84, %v283
    %v348 = vsub.f32 %v85, %v284
    %v349 = vsub.f32 %v86, %v285
    %v350 = vsub.f32 %v87, %v286
    %v351 = vsub.f32 %v88, %v287
    %v352 = vsub.f32 %v89, %v288
    %v353 = vsub.f32 %v90, %v289
    %v354 = vsub.f32 %v91, %v290
    %v355 = vsub.f32 %v92, %v291
    %v356 = vsub.f32 %v93, %v292
    %v357 = vsub.f32 %v94, %v293
    %v358 = vsub.f32 %v95, %v294
    %v359 = vsub.f32 %v96, %v295
    %v360 = vsub.f32 %v97, %v296
    %v361 = vsub.f32 %v98, %v297
    %v362 = vsub.f32 %v99, %v298
    %v363 = vsub.f32 %v100, %v299
    %v364 = vsub.f32 %v101, %v300
    %v365 = vsub.f32 %v102, %v301
    %v366 = vsub.f32 %v103, %v302
    %v367 = vsub.f32 %v104, %v303
    %v368 = vsub.f32 %v105, %v304
    %v369 = vsub.f32 %v106, %v305
    %v370 = vsub.f32 %v107, %v306
    %v371 = vsub.f32 %v108, %v307
    %v372 = vmul.f32 %v308, %v308
    %v373 = vmul.f32 %v309, %v309
    %v374 = vmul.f32 %v310, %v310
    %v375 = vmul.f32 %v311, %v311
    %v376 = vmul.f32 %v312, %v312
    %v377 = vmul.f32 %v313, %v313
    %v378 = vmul.f32 %v314, %v314
    %v379 = vmul.f32 %v315, %v315
    %v380 = vmul.f32 %v316, %v316
    %v381 = vmul.f32 %v317, %v317
    %v382 = vmul.f32 %v318, %v318
    %v383 = vmul.f32 %v319, %v319
    %v384 = vmul.f32 %v320, %v320
    %v385 = vmul.f32 %v321, %v321
    %v386 = vmul.f32 %v322, %v322
    %v387 = vmul.f32 %v323, %v323
    %v388 = vmul.f32 %v324, %v324
    %v389 = vmul.f32 %v325, %v325
    %v390 = vmul.f32 %v326, %v326
    %v391 = vmul.f32 %v327, %v327
    %v392 = vmul.f32 %v328, %v328
    %v393 = vmul.f32 %v329, %v329
    %v394 = vmul.f32 %v330, %v330
    %v395 = vmul.f32 %v331, %v331
    %v396 = vmul.f32 %v332, %v332
    %v397 = vmul.f32 %v333, %v333
    %v398 = vmul.f32 %v334, %v334
    %v399 = vmul.f32 %v335, %v335
    %v400 = vmul.f32 %v336, %v336
    %v401 = vmul.f32 %v337, %v337
    %v402 = vmul.f32 %v338, %v338
    %v403 = vmul.f32 %v339, %v339
    %v404 = vmul.f32 %v340, %v340
    %v405 = vmul.f32 %v341, %v341
    %v406 = vmul.f32 %v342, %v342
    %v407 = vmul.f32 %v343, %v343
    %v408 = vmul.f32 %v344, %v344
    %v409 = vmul.f32 %v345, %v345
    %v410 = vmul.f32 %v346, %v346
    %v411 = vmul.f32 %v347, %v347
    %v412 = vmul.f32 %v348, %v348
    %v413 = vmul.f32 %v349, %v349
    %v414 = vmul.f32 %v350, %v350
    %v415 = vmul.f32 %v351, %v351
    %v416 = vmul.f32 %v352, %v352
    %v417 = vmul.f32 %v353, %v353
    %v418 = vmul.f32 %v354, %v354
    %v419 = vmul.f32 %v355, %v355
    %v420 = vmul.f32 %v356, %v356
    %v421 = vmul.f32 %v357, %v357
    %v422 = vmul.f32 %v358, %v358
    %v423 = vmul.f32 %v359, %v359
    %v424 = vmul.f32 %v360, %v360
    %v425 = vmul.f32 %v361, %v361
    %v426 = vmul.f32 %v362, %v362
    %v427 = vmul.f32 %v363, %v363
    %v428 = vmul.f32 %v364, %v364
    %v429 = vmul.f32 %v365, %v365
    %v430 = vmul.f32 %v366, %v366
    %v431 = vmul.f32 %v367, %v367
    %v432 = vmul.f32 %v368, %v368
    %v433 = vmul.f32 %v369, %v369
    %v434 = vmul.f32 %v370, %v370
    %v435 = vmul.f32 %v371, %v371
    %436 = vadd.xlane.f32.xlu0 %v372
    %v437 = vpop.xlane.xlu0 %436
    %438 = vadd.xlane.f32.xlu0 %v373
    %v439 = vpop.xlane.xlu0 %438
    %440 = vadd.xlane.f32.xlu0 %v374
    %v441 = vpop.xlane.xlu0 %440
    %442 = vadd.xlane.f32.xlu0 %v375
    %v443 = vpop.xlane.xlu0 %442
    %444 = vadd.xlane.f32.xlu0 %v376
    %v445 = vpop.xlane.xlu0 %444
    %446 = vadd.xlane.f32.xlu0 %v377
    %v447 = vpop.xlane.xlu0 %446
    %448 = vadd.xlane.f32.xlu0 %v378
    %v449 = vpop.xlane.xlu0 %448
    %450 = vadd.xlane.f32.xlu0 %v379
    %v451 = vpop.xlane.xlu0 %450
    %452 = vadd.xlane.f32.xlu0 %v380
    %v453 = vpop.xlane.xlu0 %452
    %454 = vadd.xlane.f32.xlu0 %v381
    %v455 = vpop.xlane.xlu0 %454
    %456 = vadd.xlane.f32.xlu0 %v382
    %v457 = vpop.xlane.xlu0 %456
    %458 = vadd.xlane.f32.xlu0 %v383
    %v459 = vpop.xlane.xlu0 %458
    %460 = vadd.xlane.f32.xlu0 %v384
    %v461 = vpop.xlane.xlu0 %460
    %462 = vadd.xlane.f32.xlu0 %v385
    %v463 = vpop.xlane.xlu0 %462
    %464 = vadd.xlane.f32.xlu0 %v386
    %v465 = vpop.xlane.xlu0 %464
    %466 = vadd.xlane.f32.xlu0 %v387
    %v467 = vpop.xlane.xlu0 %466
    %468 = vadd.xlane.f32.xlu0 %v388
    %v469 = vpop.xlane.xlu0 %468
    %470 = vadd.xlane.f32.xlu0 %v389
    %v471 = vpop.xlane.xlu0 %470
    %472 = vadd.xlane.f32.xlu0 %v390
    %v473 = vpop.xlane.xlu0 %472
    %474 = vadd.xlane.f32.xlu0 %v391
    %v475 = vpop.xlane.xlu0 %474
    %476 = vadd.xlane.f32.xlu0 %v392
    %v477 = vpop.xlane.xlu0 %476
    %478 = vadd.xlane.f32.xlu0 %v393
    %v479 = vpop.xlane.xlu0 %478
    %480 = vadd.xlane.f32.xlu0 %v394
    %v481 = vpop.xlane.xlu0 %480
    %482 = vadd.xlane.f32.xlu0 %v395
    %v483 = vpop.xlane.xlu0 %482
    %484 = vadd.xlane.f32.xlu0 %v396
    %v485 = vpop.xlane.xlu0 %484
    %486 = vadd.xlane.f32.xlu0 %v397
    %v487 = vpop.xlane.xlu0 %486
    %488 = vadd.xlane.f32.xlu0 %v398
    %v489 = vpop.xlane.xlu0 %488
    %490 = vadd.xlane.f32.xlu0 %v399
    %v491 = vpop.xlane.xlu0 %490
    %492 = vadd.xlane.f32.xlu0 %v400
    %v493 = vpop.xlane.xlu0 %492
    %494 = vadd.xlane.f32.xlu0 %v401
    %v495 = vpop.xlane.xlu0 %494
    %496 = vadd.xlane.f32.xlu0 %v402
    %v497 = vpop.xlane.xlu0 %496
    %498 = vadd.xlane.f32.xlu0 %v403
    %v499 = vpop.xlane.xlu0 %498
    %500 = vadd.xlane.f32.xlu0 %v404
    %v501 = vpop.xlane.xlu0 %500
    %502 = vadd.xlane.f32.xlu0 %v405
    %v503 = vpop.xlane.xlu0 %502
    %504 = vadd.xlane.f32.xlu0 %v406
    %v505 = vpop.xlane.xlu0 %504
    %506 = vadd.xlane.f32.xlu0 %v407
    %v507 = vpop.xlane.xlu0 %506
    %508 = vadd.xlane.f32.xlu0 %v408
    %v509 = vpop.xlane.xlu0 %508
    %510 = vadd.xlane.f32.xlu0 %v409
    %v511 = vpop.xlane.xlu0 %510
    %512 = vadd.xlane.f32.xlu0 %v410
    %v513 = vpop.xlane.xlu0 %512
    %514 = vadd.xlane.f32.xlu0 %v411
    %v515 = vpop.xlane.xlu0 %514
    %516 = vadd.xlane.f32.xlu0 %v412
    %v517 = vpop.xlane.xlu0 %516
    %518 = vadd.xlane.f32.xlu0 %v413
    %v519 = vpop.xlane.xlu0 %518
    %520 = vadd.xlane.f32.xlu0 %v414
    %v521 = vpop.xlane.xlu0 %520
    %522 = vadd.xlane.f32.xlu0 %v415
    %v523 = vpop.xlane.xlu0 %522
    %524 = vadd.xlane.f32.xlu0 %v416
    %v525 = vpop.xlane.xlu0 %524
    %526 = vadd.xlane.f32.xlu0 %v417
    %v527 = vpop.xlane.xlu0 %526
    %528 = vadd.xlane.f32.xlu0 %v418
    %v529 = vpop.xlane.xlu0 %528
    %530 = vadd.xlane.f32.xlu0 %v419
    %v531 = vpop.xlane.xlu0 %530
    %532 = vadd.xlane.f32.xlu0 %v420
    %v533 = vpop.xlane.xlu0 %532
    %534 = vadd.xlane.f32.xlu0 %v421
    %v535 = vpop.xlane.xlu0 %534
    %536 = vadd.xlane.f32.xlu0 %v422
    %v537 = vpop.xlane.xlu0 %536
    %538 = vadd.xlane.f32.xlu0 %v423
    %v539 = vpop.xlane.xlu0 %538
    %540 = vadd.xlane.f32.xlu0 %v424
    %v541 = vpop.xlane.xlu0 %540
    %542 = vadd.xlane.f32.xlu0 %v425
    %v543 = vpop.xlane.xlu0 %542
    %544 = vadd.xlane.f32.xlu0 %v426
    %v545 = vpop.xlane.xlu0 %544
    %546 = vadd.xlane.f32.xlu0 %v427
    %v547 = vpop.xlane.xlu0 %546
    %548 = vadd.xlane.f32.xlu0 %v428
    %v549 = vpop.xlane.xlu0 %548
    %550 = vadd.xlane.f32.xlu0 %v429
    %v551 = vpop.xlane.xlu0 %550
    %552 = vadd.xlane.f32.xlu0 %v430
    %v553 = vpop.xlane.xlu0 %552
    %554 = vadd.xlane.f32.xlu0 %v431
    %v555 = vpop.xlane.xlu0 %554
    %556 = vadd.xlane.f32.xlu0 %v432
    %v557 = vpop.xlane.xlu0 %556
    %558 = vadd.xlane.f32.xlu0 %v433
    %v559 = vpop.xlane.xlu0 %558
    %560 = vadd.xlane.f32.xlu0 %v434
    %v561 = vpop.xlane.xlu0 %560
    %562 = vadd.xlane.f32.xlu0 %v435
    %v563 = vpop.xlane.xlu0 %562
    %v564 = vmul.f32 %v437, %v243
    %v565 = vmul.f32 %v439, %v243
    %v566 = vmul.f32 %v441, %v243
    %v567 = vmul.f32 %v443, %v243
    %v568 = vmul.f32 %v445, %v243
    %v569 = vmul.f32 %v447, %v243
    %v570 = vmul.f32 %v449, %v243
    %v571 = vmul.f32 %v451, %v243
    %v572 = vmul.f32 %v453, %v243
    %v573 = vmul.f32 %v455, %v243
    %v574 = vmul.f32 %v457, %v243
    %v575 = vmul.f32 %v459, %v243
    %v576 = vmul.f32 %v461, %v243
    %v577 = vmul.f32 %v463, %v243
    %v578 = vmul.f32 %v465, %v243
    %v579 = vmul.f32 %v467, %v243
    %v580 = vmul.f32 %v469, %v243
    %v581 = vmul.f32 %v471, %v243
    %v582 = vmul.f32 %v473, %v243
    %v583 = vmul.f32 %v475, %v243
    %v584 = vmul.f32 %v477, %v243
    %v585 = vmul.f32 %v479, %v243
    %v586 = vmul.f32 %v481, %v243
    %v587 = vmul.f32 %v483, %v243
    %v588 = vmul.f32 %v485, %v243
    %v589 = vmul.f32 %v487, %v243
    %v590 = vmul.f32 %v489, %v243
    %v591 = vmul.f32 %v491, %v243
    %v592 = vmul.f32 %v493, %v243
    %v593 = vmul.f32 %v495, %v243
    %v594 = vmul.f32 %v497, %v243
    %v595 = vmul.f32 %v499, %v243
    %v596 = vmul.f32 %v501, %v243
    %v597 = vmul.f32 %v503, %v243
    %v598 = vmul.f32 %v505, %v243
    %v599 = vmul.f32 %v507, %v243
    %v600 = vmul.f32 %v509, %v243
    %v601 = vmul.f32 %v511, %v243
    %v602 = vmul.f32 %v513, %v243
    %v603 = vmul.f32 %v515, %v243
    %v604 = vmul.f32 %v517, %v243
    %v605 = vmul.f32 %v519, %v243
    %v606 = vmul.f32 %v521, %v243
    %v607 = vmul.f32 %v523, %v243
    %v608 = vmul.f32 %v525, %v243
    %v609 = vmul.f32 %v527, %v243
    %v610 = vmul.f32 %v529, %v243
    %v611 = vmul.f32 %v531, %v243
    %v612 = vmul.f32 %v533, %v243
    %v613 = vmul.f32 %v535, %v243
    %v614 = vmul.f32 %v537, %v243
    %v615 = vmul.f32 %v539, %v243
    %v616 = vmul.f32 %v541, %v243
    %v617 = vmul.f32 %v543, %v243
    %v618 = vmul.f32 %v545, %v243
    %v619 = vmul.f32 %v547, %v243
    %v620 = vmul.f32 %v549, %v243
    %v621 = vmul.f32 %v551, %v243
    %v622 = vmul.f32 %v553, %v243
    %v623 = vmul.f32 %v555, %v243
    %v624 = vmul.f32 %v557, %v243
    %v625 = vmul.f32 %v559, %v243
    %v626 = vmul.f32 %v561, %v243
    %v627 = vmul.f32 %v563, %v243
    %v628 = vadd.f32 %v564, 1e-05
    %v629 = vadd.f32 %v565, 1e-05
    %v630 = vadd.f32 %v566, 1e-05
    %v631 = vadd.f32 %v567, 1e-05
    %v632 = vadd.f32 %v568, 1e-05
    %v633 = vadd.f32 %v569, 1e-05
    %v634 = vadd.f32 %v570, 1e-05
    %v635 = vadd.f32 %v571, 1e-05
    %v636 = vadd.f32 %v572, 1e-05
    %v637 = vadd.f32 %v573, 1e-05
    %v638 = vadd.f32 %v574, 1e-05
    %v639 = vadd.f32 %v575, 1e-05
    %v640 = vadd.f32 %v576, 1e-05
    %v641 = vadd.f32 %v577, 1e-05
    %v642 = vadd.f32 %v578, 1e-05
    %v643 = vadd.f32 %v579, 1e-05
    %v644 = vadd.f32 %v580, 1e-05
    %v645 = vadd.f32 %v581, 1e-05
    %v646 = vadd.f32 %v582, 1e-05
    %v647 = vadd.f32 %v583, 1e-05
    %v648 = vadd.f32 %v584, 1e-05
    %v649 = vadd.f32 %v585, 1e-05
    %v650 = vadd.f32 %v586, 1e-05
    %v651 = vadd.f32 %v587, 1e-05
    %v652 = vadd.f32 %v588, 1e-05
    %v653 = vadd.f32 %v589, 1e-05
    %v654 = vadd.f32 %v590, 1e-05
    %v655 = vadd.f32 %v591, 1e-05
    %v656 = vadd.f32 %v592, 1e-05
    %v657 = vadd.f32 %v593, 1e-05
    %v658 = vadd.f32 %v594, 1e-05
    %v659 = vadd.f32 %v595, 1e-05
    %v660 = vadd.f32 %v596, 1e-05
    %v661 = vadd.f32 %v597, 1e-05
    %v662 = vadd.f32 %v598, 1e-05
    %v663 = vadd.f32 %v599, 1e-05
    %v664 = vadd.f32 %v600, 1e-05
    %v665 = vadd.f32 %v601, 1e-05
    %v666 = vadd.f32 %v602, 1e-05
    %v667 = vadd.f32 %v603, 1e-05
    %v668 = vadd.f32 %v604, 1e-05
    %v669 = vadd.f32 %v605, 1e-05
    %v670 = vadd.f32 %v606, 1e-05
    %v671 = vadd.f32 %v607, 1e-05
    %v672 = vadd.f32 %v608, 1e-05
    %v673 = vadd.f32 %v609, 1e-05
    %v674 = vadd.f32 %v610, 1e-05
    %v675 = vadd.f32 %v611, 1e-05
    %v676 = vadd.f32 %v612, 1e-05
    %v677 = vadd.f32 %v613, 1e-05
    %v678 = vadd.f32 %v614, 1e-05
    %v679 = vadd.f32 %v615, 1e-05
    %v680 = vadd.f32 %v616, 1e-05
    %v681 = vadd.f32 %v617, 1e-05
    %v682 = vadd.f32 %v618, 1e-05
    %v683 = vadd.f32 %v619, 1e-05
    %v684 = vadd.f32 %v620, 1e-05
    %v685 = vadd.f32 %v621, 1e-05
    %v686 = vadd.f32 %v622, 1e-05
    %v687 = vadd.f32 %v623, 1e-05
    %v688 = vadd.f32 %v624, 1e-05
    %v689 = vadd.f32 %v625, 1e-05
    %v690 = vadd.f32 %v626, 1e-05
    %v691 = vadd.f32 %v627, 1e-05
    %v692 = vrsqrt.pop %v628
    %v693 = vmul.f32 %v692, %v628
    %v694 = vmul.f32 %v693, %v692
    %v695 = vmul.f32 0.5, %v694
    %v696 = vsub.f32 1.5, %v695
    %v697 = vmul.f32 %v692, %v696
    %vm698 = vweird.f32 %v628
    %vm699 = vweird.f32 %v692
    %vm700 = vmor %vm698, %vm699
    %v701 = vsel %vm700, %v692, %v697
    %v702 = vrsqrt.pop %v629
    %v703 = vmul.f32 %v702, %v629
    %v704 = vmul.f32 %v703, %v702
    %v705 = vmul.f32 0.5, %v704
    %v706 = vsub.f32 1.5, %v705
    %v707 = vmul.f32 %v702, %v706
    %vm708 = vweird.f32 %v629
    %vm709 = vweird.f32 %v702
    %vm710 = vmor %vm708, %vm709
    %v711 = vsel %vm710, %v702, %v707
    %v712 = vrsqrt.pop %v630
    %v713 = vmul.f32 %v712, %v630
    %v714 = vmul.f32 %v713, %v712
    %v715 = vmul.f32 0.5, %v714
    %v716 = vsub.f32 1.5, %v715
    %v717 = vmul.f32 %v712, %v716
    %vm718 = vweird.f32 %v630
    %vm719 = vweird.f32 %v712
    %vm720 = vmor %vm718, %vm719
    %v721 = vsel %vm720, %v712, %v717
    %v722 = vrsqrt.pop %v631
    %v723 = vmul.f32 %v722, %v631
    %v724 = vmul.f32 %v723, %v722
    %v725 = vmul.f32 0.5, %v724
    %v726 = vsub.f32 1.5, %v725
    %v727 = vmul.f32 %v722, %v726
    %vm728 = vweird.f32 %v631
    %vm729 = vweird.f32 %v722
    %vm730 = vmor %vm728, %vm729
    %v731 = vsel %vm730, %v722, %v727
    %v732 = vrsqrt.pop %v632
    %v733 = vmul.f32 %v732, %v632
    %v734 = vmul.f32 %v733, %v732
    %v735 = vmul.f32 0.5, %v734
    %v736 = vsub.f32 1.5, %v735
    %v737 = vmul.f32 %v732, %v736
    %vm738 = vweird.f32 %v632
    %vm739 = vweird.f32 %v732
    %vm740 = vmor %vm738, %vm739
    %v741 = vsel %vm740, %v732, %v737
    %v742 = vrsqrt.pop %v633
    %v743 = vmul.f32 %v742, %v633
    %v744 = vmul.f32 %v743, %v742
    %v745 = vmul.f32 0.5, %v744
    %v746 = vsub.f32 1.5, %v745
    %v747 = vmul.f32 %v742, %v746
    %vm748 = vweird.f32 %v633
    %vm749 = vweird.f32 %v742
    %vm750 = vmor %vm748, %vm749
    %v751 = vsel %vm750, %v742, %v747
    %v752 = vrsqrt.pop %v634
    %v753 = vmul.f32 %v752, %v634
    %v754 = vmul.f32 %v753, %v752
    %v755 = vmul.f32 0.5, %v754
    %v756 = vsub.f32 1.5, %v755
    %v757 = vmul.f32 %v752, %v756
    %vm758 = vweird.f32 %v634
    %vm759 = vweird.f32 %v752
    %vm760 = vmor %vm758, %vm759
    %v761 = vsel %vm760, %v752, %v757
    %v762 = vrsqrt.pop %v635
    %v763 = vmul.f32 %v762, %v635
    %v764 = vmul.f32 %v763, %v762
    %v765 = vmul.f32 0.5, %v764
    %v766 = vsub.f32 1.5, %v765
    %v767 = vmul.f32 %v762, %v766
    %vm768 = vweird.f32 %v635
    %vm769 = vweird.f32 %v762
    %vm770 = vmor %vm768, %vm769
    %v771 = vsel %vm770, %v762, %v767
    %v772 = vrsqrt.pop %v636
    %v773 = vmul.f32 %v772, %v636
    %v774 = vmul.f32 %v773, %v772
    %v775 = vmul.f32 0.5, %v774
    %v776 = vsub.f32 1.5, %v775
    %v777 = vmul.f32 %v772, %v776
    %vm778 = vweird.f32 %v636
    %vm779 = vweird.f32 %v772
    %vm780 = vmor %vm778, %vm779
    %v781 = vsel %vm780, %v772, %v777
    %v782 = vrsqrt.pop %v637
    %v783 = vmul.f32 %v782, %v637
    %v784 = vmul.f32 %v783, %v782
    %v785 = vmul.f32 0.5, %v784
    %v786 = vsub.f32 1.5, %v785
    %v787 = vmul.f32 %v782, %v786
    %vm788 = vweird.f32 %v637
    %vm789 = vweird.f32 %v782
    %vm790 = vmor %vm788, %vm789
    %v791 = vsel %vm790, %v782, %v787
    %v792 = vrsqrt.pop %v638
    %v793 = vmul.f32 %v792, %v638
    %v794 = vmul.f32 %v793, %v792
    %v795 = vmul.f32 0.5, %v794
    %v796 = vsub.f32 1.5, %v795
    %v797 = vmul.f32 %v792, %v796
    %vm798 = vweird.f32 %v638
    %vm799 = vweird.f32 %v792
    %vm800 = vmor %vm798, %vm799
    %v801 = vsel %vm800, %v792, %v797
    %v802 = vrsqrt.pop %v639
    %v803 = vmul.f32 %v802, %v639
    %v804 = vmul.f32 %v803, %v802
    %v805 = vmul.f32 0.5, %v804
    %v806 = vsub.f32 1.5, %v805
    %v807 = vmul.f32 %v802, %v806
    %vm808 = vweird.f32 %v639
    %vm809 = vweird.f32 %v802
    %vm810 = vmor %vm808, %vm809
    %v811 = vsel %vm810, %v802, %v807
    %v812 = vrsqrt.pop %v640
    %v813 = vmul.f32 %v812, %v640
    %v814 = vmul.f32 %v813, %v812
    %v815 = vmul.f32 0.5, %v814
    %v816 = vsub.f32 1.5, %v815
    %v817 = vmul.f32 %v812, %v816
    %vm818 = vweird.f32 %v640
    %vm819 = vweird.f32 %v812
    %vm820 = vmor %vm818, %vm819
    %v821 = vsel %vm820, %v812, %v817
    %v822 = vrsqrt.pop %v641
    %v823 = vmul.f32 %v822, %v641
    %v824 = vmul.f32 %v823, %v822
    %v825 = vmul.f32 0.5, %v824
    %v826 = vsub.f32 1.5, %v825
    %v827 = vmul.f32 %v822, %v826
    %vm828 = vweird.f32 %v641
    %vm829 = vweird.f32 %v822
    %vm830 = vmor %vm828, %vm829
    %v831 = vsel %vm830, %v822, %v827
    %v832 = vrsqrt.pop %v642
    %v833 = vmul.f32 %v832, %v642
    %v834 = vmul.f32 %v833, %v832
    %v835 = vmul.f32 0.5, %v834
    %v836 = vsub.f32 1.5, %v835
    %v837 = vmul.f32 %v832, %v836
    %vm838 = vweird.f32 %v642
    %vm839 = vweird.f32 %v832
    %vm840 = vmor %vm838, %vm839
    %v841 = vsel %vm840, %v832, %v837
    %v842 = vrsqrt.pop %v643
    %v843 = vmul.f32 %v842, %v643
    %v844 = vmul.f32 %v843, %v842
    %v845 = vmul.f32 0.5, %v844
    %v846 = vsub.f32 1.5, %v845
    %v847 = vmul.f32 %v842, %v846
    %vm848 = vweird.f32 %v643
    %vm849 = vweird.f32 %v842
    %vm850 = vmor %vm848, %vm849
    %v851 = vsel %vm850, %v842, %v847
    %v852 = vrsqrt.pop %v644
    %v853 = vmul.f32 %v852, %v644
    %v854 = vmul.f32 %v853, %v852
    %v855 = vmul.f32 0.5, %v854
    %v856 = vsub.f32 1.5, %v855
    %v857 = vmul.f32 %v852, %v856
    %vm858 = vweird.f32 %v644
    %vm859 = vweird.f32 %v852
    %vm860 = vmor %vm858, %vm859
    %v861 = vsel %vm860, %v852, %v857
    %v862 = vrsqrt.pop %v645
    %v863 = vmul.f32 %v862, %v645
    %v864 = vmul.f32 %v863, %v862
    %v865 = vmul.f32 0.5, %v864
    %v866 = vsub.f32 1.5, %v865
    %v867 = vmul.f32 %v862, %v866
    %vm868 = vweird.f32 %v645
    %vm869 = vweird.f32 %v862
    %vm870 = vmor %vm868, %vm869
    %v871 = vsel %vm870, %v862, %v867
    %v872 = vrsqrt.pop %v646
    %v873 = vmul.f32 %v872, %v646
    %v874 = vmul.f32 %v873, %v872
    %v875 = vmul.f32 0.5, %v874
    %v876 = vsub.f32 1.5, %v875
    %v877 = vmul.f32 %v872, %v876
    %vm878 = vweird.f32 %v646
    %vm879 = vweird.f32 %v872
    %vm880 = vmor %vm878, %vm879
    %v881 = vsel %vm880, %v872, %v877
    %v882 = vrsqrt.pop %v647
    %v883 = vmul.f32 %v882, %v647
    %v884 = vmul.f32 %v883, %v882
    %v885 = vmul.f32 0.5, %v884
    %v886 = vsub.f32 1.5, %v885
    %v887 = vmul.f32 %v882, %v886
    %vm888 = vweird.f32 %v647
    %vm889 = vweird.f32 %v882
    %vm890 = vmor %vm888, %vm889
    %v891 = vsel %vm890, %v882, %v887
    %v892 = vrsqrt.pop %v648
    %v893 = vmul.f32 %v892, %v648
    %v894 = vmul.f32 %v893, %v892
    %v895 = vmul.f32 0.5, %v894
    %v896 = vsub.f32 1.5, %v895
    %v897 = vmul.f32 %v892, %v896
    %vm898 = vweird.f32 %v648
    %vm899 = vweird.f32 %v892
    %vm900 = vmor %vm898, %vm899
    %v901 = vsel %vm900, %v892, %v897
    %v902 = vrsqrt.pop %v649
    %v903 = vmul.f32 %v902, %v649
    %v904 = vmul.f32 %v903, %v902
    %v905 = vmul.f32 0.5, %v904
    %v906 = vsub.f32 1.5, %v905
    %v907 = vmul.f32 %v902, %v906
    %vm908 = vweird.f32 %v649
    %vm909 = vweird.f32 %v902
    %vm910 = vmor %vm908, %vm909
    %v911 = vsel %vm910, %v902, %v907
    %v912 = vrsqrt.pop %v650
    %v913 = vmul.f32 %v912, %v650
    %v914 = vmul.f32 %v913, %v912
    %v915 = vmul.f32 0.5, %v914
    %v916 = vsub.f32 1.5, %v915
    %v917 = vmul.f32 %v912, %v916
    %vm918 = vweird.f32 %v650
    %vm919 = vweird.f32 %v912
    %vm920 = vmor %vm918, %vm919
    %v921 = vsel %vm920, %v912, %v917
    %v922 = vrsqrt.pop %v651
    %v923 = vmul.f32 %v922, %v651
    %v924 = vmul.f32 %v923, %v922
    %v925 = vmul.f32 0.5, %v924
    %v926 = vsub.f32 1.5, %v925
    %v927 = vmul.f32 %v922, %v926
    %vm928 = vweird.f32 %v651
    %vm929 = vweird.f32 %v922
    %vm930 = vmor %vm928, %vm929
    %v931 = vsel %vm930, %v922, %v927
    %v932 = vrsqrt.pop %v652
    %v933 = vmul.f32 %v932, %v652
    %v934 = vmul.f32 %v933, %v932
    %v935 = vmul.f32 0.5, %v934
    %v936 = vsub.f32 1.5, %v935
    %v937 = vmul.f32 %v932, %v936
    %vm938 = vweird.f32 %v652
    %vm939 = vweird.f32 %v932
    %vm940 = vmor %vm938, %vm939
    %v941 = vsel %vm940, %v932, %v937
    %v942 = vrsqrt.pop %v653
    %v943 = vmul.f32 %v942, %v653
    %v944 = vmul.f32 %v943, %v942
    %v945 = vmul.f32 0.5, %v944
    %v946 = vsub.f32 1.5, %v945
    %v947 = vmul.f32 %v942, %v946
    %vm948 = vweird.f32 %v653
    %vm949 = vweird.f32 %v942
    %vm950 = vmor %vm948, %vm949
    %v951 = vsel %vm950, %v942, %v947
    %v952 = vrsqrt.pop %v654
    %v953 = vmul.f32 %v952, %v654
    %v954 = vmul.f32 %v953, %v952
    %v955 = vmul.f32 0.5, %v954
    %v956 = vsub.f32 1.5, %v955
    %v957 = vmul.f32 %v952, %v956
    %vm958 = vweird.f32 %v654
    %vm959 = vweird.f32 %v952
    %vm960 = vmor %vm958, %vm959
    %v961 = vsel %vm960, %v952, %v957
    %v962 = vrsqrt.pop %v655
    %v963 = vmul.f32 %v962, %v655
    %v964 = vmul.f32 %v963, %v962
    %v965 = vmul.f32 0.5, %v964
    %v966 = vsub.f32 1.5, %v965
    %v967 = vmul.f32 %v962, %v966
    %vm968 = vweird.f32 %v655
    %vm969 = vweird.f32 %v962
    %vm970 = vmor %vm968, %vm969
    %v971 = vsel %vm970, %v962, %v967
    %v972 = vrsqrt.pop %v656
    %v973 = vmul.f32 %v972, %v656
    %v974 = vmul.f32 %v973, %v972
    %v975 = vmul.f32 0.5, %v974
    %v976 = vsub.f32 1.5, %v975
    %v977 = vmul.f32 %v972, %v976
    %vm978 = vweird.f32 %v656
    %vm979 = vweird.f32 %v972
    %vm980 = vmor %vm978, %vm979
    %v981 = vsel %vm980, %v972, %v977
    %v982 = vrsqrt.pop %v657
    %v983 = vmul.f32 %v982, %v657
    %v984 = vmul.f32 %v983, %v982
    %v985 = vmul.f32 0.5, %v984
    %v986 = vsub.f32 1.5, %v985
    %v987 = vmul.f32 %v982, %v986
    %vm988 = vweird.f32 %v657
    %vm989 = vweird.f32 %v982
    %vm990 = vmor %vm988, %vm989
    %v991 = vsel %vm990, %v982, %v987
    %v992 = vrsqrt.pop %v658
    %v993 = vmul.f32 %v992, %v658
    %v994 = vmul.f32 %v993, %v992
    %v995 = vmul.f32 0.5, %v994
    %v996 = vsub.f32 1.5, %v995
    %v997 = vmul.f32 %v992, %v996
    %vm998 = vweird.f32 %v658
    %vm999 = vweird.f32 %v992
    %vm1000 = vmor %vm998, %vm999
    %v1001 = vsel %vm1000, %v992, %v997
    %v1002 = vrsqrt.pop %v659
    %v1003 = vmul.f32 %v1002, %v659
    %v1004 = vmul.f32 %v1003, %v1002
    %v1005 = vmul.f32 0.5, %v1004
    %v1006 = vsub.f32 1.5, %v1005
    %v1007 = vmul.f32 %v1002, %v1006
    %vm1008 = vweird.f32 %v659
    %vm1009 = vweird.f32 %v1002
    %vm1010 = vmor %vm1008, %vm1009
    %v1011 = vsel %vm1010, %v1002, %v1007
    %v1012 = vrsqrt.pop %v660
    %v1013 = vmul.f32 %v1012, %v660
    %v1014 = vmul.f32 %v1013, %v1012
    %v1015 = vmul.f32 0.5, %v1014
    %v1016 = vsub.f32 1.5, %v1015
    %v1017 = vmul.f32 %v1012, %v1016
    %vm1018 = vweird.f32 %v660
    %vm1019 = vweird.f32 %v1012
    %vm1020 = vmor %vm1018, %vm1019
    %v1021 = vsel %vm1020, %v1012, %v1017
    %v1022 = vrsqrt.pop %v661
    %v1023 = vmul.f32 %v1022, %v661
    %v1024 = vmul.f32 %v1023, %v1022
    %v1025 = vmul.f32 0.5, %v1024
    %v1026 = vsub.f32 1.5, %v1025
    %v1027 = vmul.f32 %v1022, %v1026
    %vm1028 = vweird.f32 %v661
    %vm1029 = vweird.f32 %v1022
    %vm1030 = vmor %vm1028, %vm1029
    %v1031 = vsel %vm1030, %v1022, %v1027
    %v1032 = vrsqrt.pop %v662
    %v1033 = vmul.f32 %v1032, %v662
    %v1034 = vmul.f32 %v1033, %v1032
    %v1035 = vmul.f32 0.5, %v1034
    %v1036 = vsub.f32 1.5, %v1035
    %v1037 = vmul.f32 %v1032, %v1036
    %vm1038 = vweird.f32 %v662
    %vm1039 = vweird.f32 %v1032
    %vm1040 = vmor %vm1038, %vm1039
    %v1041 = vsel %vm1040, %v1032, %v1037
    %v1042 = vrsqrt.pop %v663
    %v1043 = vmul.f32 %v1042, %v663
    %v1044 = vmul.f32 %v1043, %v1042
    %v1045 = vmul.f32 0.5, %v1044
    %v1046 = vsub.f32 1.5, %v1045
    %v1047 = vmul.f32 %v1042, %v1046
    %vm1048 = vweird.f32 %v663
    %vm1049 = vweird.f32 %v1042
    %vm1050 = vmor %vm1048, %vm1049
    %v1051 = vsel %vm1050, %v1042, %v1047
    %v1052 = vrsqrt.pop %v664
    %v1053 = vmul.f32 %v1052, %v664
    %v1054 = vmul.f32 %v1053, %v1052
    %v1055 = vmul.f32 0.5, %v1054
    %v1056 = vsub.f32 1.5, %v1055
    %v1057 = vmul.f32 %v1052, %v1056
    %vm1058 = vweird.f32 %v664
    %vm1059 = vweird.f32 %v1052
    %vm1060 = vmor %vm1058, %vm1059
    %v1061 = vsel %vm1060, %v1052, %v1057
    %v1062 = vrsqrt.pop %v665
    %v1063 = vmul.f32 %v1062, %v665
    %v1064 = vmul.f32 %v1063, %v1062
    %v1065 = vmul.f32 0.5, %v1064
    %v1066 = vsub.f32 1.5, %v1065
    %v1067 = vmul.f32 %v1062, %v1066
    %vm1068 = vweird.f32 %v665
    %vm1069 = vweird.f32 %v1062
    %vm1070 = vmor %vm1068, %vm1069
    %v1071 = vsel %vm1070, %v1062, %v1067
    %v1072 = vrsqrt.pop %v666
    %v1073 = vmul.f32 %v1072, %v666
    %v1074 = vmul.f32 %v1073, %v1072
    %v1075 = vmul.f32 0.5, %v1074
    %v1076 = vsub.f32 1.5, %v1075
    %v1077 = vmul.f32 %v1072, %v1076
    %vm1078 = vweird.f32 %v666
    %vm1079 = vweird.f32 %v1072
    %vm1080 = vmor %vm1078, %vm1079
    %v1081 = vsel %vm1080, %v1072, %v1077
    %v1082 = vrsqrt.pop %v667
    %v1083 = vmul.f32 %v1082, %v667
    %v1084 = vmul.f32 %v1083, %v1082
    %v1085 = vmul.f32 0.5, %v1084
    %v1086 = vsub.f32 1.5, %v1085
    %v1087 = vmul.f32 %v1082, %v1086
    %vm1088 = vweird.f32 %v667
    %vm1089 = vweird.f32 %v1082
    %vm1090 = vmor %vm1088, %vm1089
    %v1091 = vsel %vm1090, %v1082, %v1087
    %v1092 = vrsqrt.pop %v668
    %v1093 = vmul.f32 %v1092, %v668
    %v1094 = vmul.f32 %v1093, %v1092
    %v1095 = vmul.f32 0.5, %v1094
    %v1096 = vsub.f32 1.5, %v1095
    %v1097 = vmul.f32 %v1092, %v1096
    %vm1098 = vweird.f32 %v668
    %vm1099 = vweird.f32 %v1092
    %vm1100 = vmor %vm1098, %vm1099
    %v1101 = vsel %vm1100, %v1092, %v1097
    %v1102 = vrsqrt.pop %v669
    %v1103 = vmul.f32 %v1102, %v669
    %v1104 = vmul.f32 %v1103, %v1102
    %v1105 = vmul.f32 0.5, %v1104
    %v1106 = vsub.f32 1.5, %v1105
    %v1107 = vmul.f32 %v1102, %v1106
    %vm1108 = vweird.f32 %v669
    %vm1109 = vweird.f32 %v1102
    %vm1110 = vmor %vm1108, %vm1109
    %v1111 = vsel %vm1110, %v1102, %v1107
    %v1112 = vrsqrt.pop %v670
    %v1113 = vmul.f32 %v1112, %v670
    %v1114 = vmul.f32 %v1113, %v1112
    %v1115 = vmul.f32 0.5, %v1114
    %v1116 = vsub.f32 1.5, %v1115
    %v1117 = vmul.f32 %v1112, %v1116
    %vm1118 = vweird.f32 %v670
    %vm1119 = vweird.f32 %v1112
    %vm1120 = vmor %vm1118, %vm1119
    %v1121 = vsel %vm1120, %v1112, %v1117
    %v1122 = vrsqrt.pop %v671
    %v1123 = vmul.f32 %v1122, %v671
    %v1124 = vmul.f32 %v1123, %v1122
    %v1125 = vmul.f32 0.5, %v1124
    %v1126 = vsub.f32 1.5, %v1125
    %v1127 = vmul.f32 %v1122, %v1126
    %vm1128 = vweird.f32 %v671
    %vm1129 = vweird.f32 %v1122
    %vm1130 = vmor %vm1128, %vm1129
    %v1131 = vsel %vm1130, %v1122, %v1127
    %v1132 = vrsqrt.pop %v672
    %v1133 = vmul.f32 %v1132, %v672
    %v1134 = vmul.f32 %v1133, %v1132
    %v1135 = vmul.f32 0.5, %v1134
    %v1136 = vsub.f32 1.5, %v1135
    %v1137 = vmul.f32 %v1132, %v1136
    %vm1138 = vweird.f32 %v672
    %vm1139 = vweird.f32 %v1132
    %vm1140 = vmor %vm1138, %vm1139
    %v1141 = vsel %vm1140, %v1132, %v1137
    %v1142 = vrsqrt.pop %v673
    %v1143 = vmul.f32 %v1142, %v673
    %v1144 = vmul.f32 %v1143, %v1142
    %v1145 = vmul.f32 0.5, %v1144
    %v1146 = vsub.f32 1.5, %v1145
    %v1147 = vmul.f32 %v1142, %v1146
    %vm1148 = vweird.f32 %v673
    %vm1149 = vweird.f32 %v1142
    %vm1150 = vmor %vm1148, %vm1149
    %v1151 = vsel %vm1150, %v1142, %v1147
    %v1152 = vrsqrt.pop %v674
    %v1153 = vmul.f32 %v1152, %v674
    %v1154 = vmul.f32 %v1153, %v1152
    %v1155 = vmul.f32 0.5, %v1154
    %v1156 = vsub.f32 1.5, %v1155
    %v1157 = vmul.f32 %v1152, %v1156
    %vm1158 = vweird.f32 %v674
    %vm1159 = vweird.f32 %v1152
    %vm1160 = vmor %vm1158, %vm1159
    %v1161 = vsel %vm1160, %v1152, %v1157
    %v1162 = vrsqrt.pop %v675
    %v1163 = vmul.f32 %v1162, %v675
    %v1164 = vmul.f32 %v1163, %v1162
    %v1165 = vmul.f32 0.5, %v1164
    %v1166 = vsub.f32 1.5, %v1165
    %v1167 = vmul.f32 %v1162, %v1166
    %vm1168 = vweird.f32 %v675
    %vm1169 = vweird.f32 %v1162
    %vm1170 = vmor %vm1168, %vm1169
    %v1171 = vsel %vm1170, %v1162, %v1167
    %v1172 = vrsqrt.pop %v676
    %v1173 = vmul.f32 %v1172, %v676
    %v1174 = vmul.f32 %v1173, %v1172
    %v1175 = vmul.f32 0.5, %v1174
    %v1176 = vsub.f32 1.5, %v1175
    %v1177 = vmul.f32 %v1172, %v1176
    %vm1178 = vweird.f32 %v676
    %vm1179 = vweird.f32 %v1172
    %vm1180 = vmor %vm1178, %vm1179
    %v1181 = vsel %vm1180, %v1172, %v1177
    %v1182 = vrsqrt.pop %v677
    %v1183 = vmul.f32 %v1182, %v677
    %v1184 = vmul.f32 %v1183, %v1182
    %v1185 = vmul.f32 0.5, %v1184
    %v1186 = vsub.f32 1.5, %v1185
    %v1187 = vmul.f32 %v1182, %v1186
    %vm1188 = vweird.f32 %v677
    %vm1189 = vweird.f32 %v1182
    %vm1190 = vmor %vm1188, %vm1189
    %v1191 = vsel %vm1190, %v1182, %v1187
    %v1192 = vrsqrt.pop %v678
    %v1193 = vmul.f32 %v1192, %v678
    %v1194 = vmul.f32 %v1193, %v1192
    %v1195 = vmul.f32 0.5, %v1194
    %v1196 = vsub.f32 1.5, %v1195
    %v1197 = vmul.f32 %v1192, %v1196
    %vm1198 = vweird.f32 %v678
    %vm1199 = vweird.f32 %v1192
    %vm1200 = vmor %vm1198, %vm1199
    %v1201 = vsel %vm1200, %v1192, %v1197
    %v1202 = vrsqrt.pop %v679
    %v1203 = vmul.f32 %v1202, %v679
    %v1204 = vmul.f32 %v1203, %v1202
    %v1205 = vmul.f32 0.5, %v1204
    %v1206 = vsub.f32 1.5, %v1205
    %v1207 = vmul.f32 %v1202, %v1206
    %vm1208 = vweird.f32 %v679
    %vm1209 = vweird.f32 %v1202
    %vm1210 = vmor %vm1208, %vm1209
    %v1211 = vsel %vm1210, %v1202, %v1207
    %v1212 = vrsqrt.pop %v680
    %v1213 = vmul.f32 %v1212, %v680
    %v1214 = vmul.f32 %v1213, %v1212
    %v1215 = vmul.f32 0.5, %v1214
    %v1216 = vsub.f32 1.5, %v1215
    %v1217 = vmul.f32 %v1212, %v1216
    %vm1218 = vweird.f32 %v680
    %vm1219 = vweird.f32 %v1212
    %vm1220 = vmor %vm1218, %vm1219
    %v1221 = vsel %vm1220, %v1212, %v1217
    %v1222 = vrsqrt.pop %v681
    %v1223 = vmul.f32 %v1222, %v681
    %v1224 = vmul.f32 %v1223, %v1222
    %v1225 = vmul.f32 0.5, %v1224
    %v1226 = vsub.f32 1.5, %v1225
    %v1227 = vmul.f32 %v1222, %v1226
    %vm1228 = vweird.f32 %v681
    %vm1229 = vweird.f32 %v1222
    %vm1230 = vmor %vm1228, %vm1229
    %v1231 = vsel %vm1230, %v1222, %v1227
    %v1232 = vrsqrt.pop %v682
    %v1233 = vmul.f32 %v1232, %v682
    %v1234 = vmul.f32 %v1233, %v1232
    %v1235 = vmul.f32 0.5, %v1234
    %v1236 = vsub.f32 1.5, %v1235
    %v1237 = vmul.f32 %v1232, %v1236
    %vm1238 = vweird.f32 %v682
    %vm1239 = vweird.f32 %v1232
    %vm1240 = vmor %vm1238, %vm1239
    %v1241 = vsel %vm1240, %v1232, %v1237
    %v1242 = vrsqrt.pop %v683
    %v1243 = vmul.f32 %v1242, %v683
    %v1244 = vmul.f32 %v1243, %v1242
    %v1245 = vmul.f32 0.5, %v1244
    %v1246 = vsub.f32 1.5, %v1245
    %v1247 = vmul.f32 %v1242, %v1246
    %vm1248 = vweird.f32 %v683
    %vm1249 = vweird.f32 %v1242
    %vm1250 = vmor %vm1248, %vm1249
    %v1251 = vsel %vm1250, %v1242, %v1247
    %v1252 = vrsqrt.pop %v684
    %v1253 = vmul.f32 %v1252, %v684
    %v1254 = vmul.f32 %v1253, %v1252
    %v1255 = vmul.f32 0.5, %v1254
    %v1256 = vsub.f32 1.5, %v1255
    %v1257 = vmul.f32 %v1252, %v1256
    %vm1258 = vweird.f32 %v684
    %vm1259 = vweird.f32 %v1252
    %vm1260 = vmor %vm1258, %vm1259
    %v1261 = vsel %vm1260, %v1252, %v1257
    %v1262 = vrsqrt.pop %v685
    %v1263 = vmul.f32 %v1262, %v685
    %v1264 = vmul.f32 %v1263, %v1262
    %v1265 = vmul.f32 0.5, %v1264
    %v1266 = vsub.f32 1.5, %v1265
    %v1267 = vmul.f32 %v1262, %v1266
    %vm1268 = vweird.f32 %v685
    %vm1269 = vweird.f32 %v1262
    %vm1270 = vmor %vm1268, %vm1269
    %v1271 = vsel %vm1270, %v1262, %v1267
    %v1272 = vrsqrt.pop %v686
    %v1273 = vmul.f32 %v1272, %v686
    %v1274 = vmul.f32 %v1273, %v1272
    %v1275 = vmul.f32 0.5, %v1274
    %v1276 = vsub.f32 1.5, %v1275
    %v1277 = vmul.f32 %v1272, %v1276
    %vm1278 = vweird.f32 %v686
    %vm1279 = vweird.f32 %v1272
    %vm1280 = vmor %vm1278, %vm1279
    %v1281 = vsel %vm1280, %v1272, %v1277
    %v1282 = vrsqrt.pop %v687
    %v1283 = vmul.f32 %v1282, %v687
    %v1284 = vmul.f32 %v1283, %v1282
    %v1285 = vmul.f32 0.5, %v1284
    %v1286 = vsub.f32 1.5, %v1285
    %v1287 = vmul.f32 %v1282, %v1286
    %vm1288 = vweird.f32 %v687
    %vm1289 = vweird.f32 %v1282
    %vm1290 = vmor %vm1288, %vm1289
    %v1291 = vsel %vm1290, %v1282, %v1287
    %v1292 = vrsqrt.pop %v688
    %v1293 = vmul.f32 %v1292, %v688
    %v1294 = vmul.f32 %v1293, %v1292
    %v1295 = vmul.f32 0.5, %v1294
    %v1296 = vsub.f32 1.5, %v1295
    %v1297 = vmul.f32 %v1292, %v1296
    %vm1298 = vweird.f32 %v688
    %vm1299 = vweird.f32 %v1292
    %vm1300 = vmor %vm1298, %vm1299
    %v1301 = vsel %vm1300, %v1292, %v1297
    %v1302 = vrsqrt.pop %v689
    %v1303 = vmul.f32 %v1302, %v689
    %v1304 = vmul.f32 %v1303, %v1302
    %v1305 = vmul.f32 0.5, %v1304
    %v1306 = vsub.f32 1.5, %v1305
    %v1307 = vmul.f32 %v1302, %v1306
    %vm1308 = vweird.f32 %v689
    %vm1309 = vweird.f32 %v1302
    %vm1310 = vmor %vm1308, %vm1309
    %v1311 = vsel %vm1310, %v1302, %v1307
    %v1312 = vrsqrt.pop %v690
    %v1313 = vmul.f32 %v1312, %v690
    %v1314 = vmul.f32 %v1313, %v1312
    %v1315 = vmul.f32 0.5, %v1314
    %v1316 = vsub.f32 1.5, %v1315
    %v1317 = vmul.f32 %v1312, %v1316
    %vm1318 = vweird.f32 %v690
    %vm1319 = vweird.f32 %v1312
    %vm1320 = vmor %vm1318, %vm1319
    %v1321 = vsel %vm1320, %v1312, %v1317
    %v1322 = vrsqrt.pop %v691
    %v1323 = vmul.f32 %v1322, %v691
    %v1324 = vmul.f32 %v1323, %v1322
    %v1325 = vmul.f32 0.5, %v1324
    %v1326 = vsub.f32 1.5, %v1325
    %v1327 = vmul.f32 %v1322, %v1326
    %vm1328 = vweird.f32 %v691
    %vm1329 = vweird.f32 %v1322
    %vm1330 = vmor %vm1328, %vm1329
    %v1331 = vsel %vm1330, %v1322, %v1327
    %v1332 = vmul.f32 %v308, %v701
    %v1333 = vmul.f32 %v309, %v711
    %v1334 = vmul.f32 %v310, %v721
    %v1335 = vmul.f32 %v311, %v731
    %v1336 = vmul.f32 %v312, %v741
    %v1337 = vmul.f32 %v313, %v751
    %v1338 = vmul.f32 %v314, %v761
    %v1339 = vmul.f32 %v315, %v771
    %v1340 = vmul.f32 %v316, %v781
    %v1341 = vmul.f32 %v317, %v791
    %v1342 = vmul.f32 %v318, %v801
    %v1343 = vmul.f32 %v319, %v811
    %v1344 = vmul.f32 %v320, %v821
    %v1345 = vmul.f32 %v321, %v831
    %v1346 = vmul.f32 %v322, %v841
    %v1347 = vmul.f32 %v323, %v851
    %v1348 = vmul.f32 %v324, %v861
    %v1349 = vmul.f32 %v325, %v871
    %v1350 = vmul.f32 %v326, %v881
    %v1351 = vmul.f32 %v327, %v891
    %v1352 = vmul.f32 %v328, %v901
    %v1353 = vmul.f32 %v329, %v911
    %v1354 = vmul.f32 %v330, %v921
    %v1355 = vmul.f32 %v331, %v931
    %v1356 = vmul.f32 %v332, %v941
    %v1357 = vmul.f32 %v333, %v951
    %v1358 = vmul.f32 %v334, %v961
    %v1359 = vmul.f32 %v335, %v971
    %v1360 = vmul.f32 %v336, %v981
    %v1361 = vmul.f32 %v337, %v991
    %v1362 = vmul.f32 %v338, %v1001
    %v1363 = vmul.f32 %v339, %v1011
    %v1364 = vmul.f32 %v340, %v1021
    %v1365 = vmul.f32 %v341, %v1031
    %v1366 = vmul.f32 %v342, %v1041
    %v1367 = vmul.f32 %v343, %v1051
    %v1368 = vmul.f32 %v344, %v1061
    %v1369 = vmul.f32 %v345, %v1071
    %v1370 = vmul.f32 %v346, %v1081
    %v1371 = vmul.f32 %v347, %v1091
    %v1372 = vmul.f32 %v348, %v1101
    %v1373 = vmul.f32 %v349, %v1111
    %v1374 = vmul.f32 %v350, %v1121
    %v1375 = vmul.f32 %v351, %v1131
    %v1376 = vmul.f32 %v352, %v1141
    %v1377 = vmul.f32 %v353, %v1151
    %v1378 = vmul.f32 %v354, %v1161
    %v1379 = vmul.f32 %v355, %v1171
    %v1380 = vmul.f32 %v356, %v1181
    %v1381 = vmul.f32 %v357, %v1191
    %v1382 = vmul.f32 %v358, %v1201
    %v1383 = vmul.f32 %v359, %v1211
    %v1384 = vmul.f32 %v360, %v1221
    %v1385 = vmul.f32 %v361, %v1231
    %v1386 = vmul.f32 %v362, %v1241
    %v1387 = vmul.f32 %v363, %v1251
    %v1388 = vmul.f32 %v364, %v1261
    %v1389 = vmul.f32 %v365, %v1271
    %v1390 = vmul.f32 %v366, %v1281
    %v1391 = vmul.f32 %v367, %v1291
    %v1392 = vmul.f32 %v368, %v1301
    %v1393 = vmul.f32 %v369, %v1311
    %v1394 = vmul.f32 %v370, %v1321
    %v1395 = vmul.f32 %v371, %v1331
    %v1396 = vld [vmem:[#allocation5] sm:$0x1]
    %v1398 = vperm.slane %v1396, 0
    %v1400 = vmul.f32 %v1332, %v1398
    %v1401 = vmul.f32 %v1333, %v1398
    %v1402 = vmul.f32 %v1334, %v1398
    %v1403 = vmul.f32 %v1335, %v1398
    %v1404 = vmul.f32 %v1336, %v1398
    %v1405 = vmul.f32 %v1337, %v1398
    %v1406 = vmul.f32 %v1338, %v1398
    %v1407 = vmul.f32 %v1339, %v1398
    %v1408 = vmul.f32 %v1340, %v1398
    %v1409 = vmul.f32 %v1341, %v1398
    %v1410 = vmul.f32 %v1342, %v1398
    %v1411 = vmul.f32 %v1343, %v1398
    %v1412 = vmul.f32 %v1344, %v1398
    %v1413 = vmul.f32 %v1345, %v1398
    %v1414 = vmul.f32 %v1346, %v1398
    %v1415 = vmul.f32 %v1347, %v1398
    %v1416 = vmul.f32 %v1348, %v1398
    %v1417 = vmul.f32 %v1349, %v1398
    %v1418 = vmul.f32 %v1350, %v1398
    %v1419 = vmul.f32 %v1351, %v1398
    %v1420 = vmul.f32 %v1352, %v1398
    %v1421 = vmul.f32 %v1353, %v1398
    %v1422 = vmul.f32 %v1354, %v1398
    %v1423 = vmul.f32 %v1355, %v1398
    %v1424 = vmul.f32 %v1356, %v1398
    %v1425 = vmul.f32 %v1357, %v1398
    %v1426 = vmul.f32 %v1358, %v1398
    %v1427 = vmul.f32 %v1359, %v1398
    %v1428 = vmul.f32 %v1360, %v1398
    %v1429 = vmul.f32 %v1361, %v1398
    %v1430 = vmul.f32 %v1362, %v1398
    %v1431 = vmul.f32 %v1363, %v1398
    %v1432 = vmul.f32 %v1364, %v1398
    %v1433 = vmul.f32 %v1365, %v1398
    %v1434 = vmul.f32 %v1366, %v1398
    %v1435 = vmul.f32 %v1367, %v1398
    %v1436 = vmul.f32 %v1368, %v1398
    %v1437 = vmul.f32 %v1369, %v1398
    %v1438 = vmul.f32 %v1370, %v1398
    %v1439 = vmul.f32 %v1371, %v1398
    %v1440 = vmul.f32 %v1372, %v1398
    %v1441 = vmul.f32 %v1373, %v1398
    %v1442 = vmul.f32 %v1374, %v1398
    %v1443 = vmul.f32 %v1375, %v1398
    %v1444 = vmul.f32 %v1376, %v1398
    %v1445 = vmul.f32 %v1377, %v1398
    %v1446 = vmul.f32 %v1378, %v1398
    %v1447 = vmul.f32 %v1379, %v1398
    %v1448 = vmul.f32 %v1380, %v1398
    %v1449 = vmul.f32 %v1381, %v1398
    %v1450 = vmul.f32 %v1382, %v1398
    %v1451 = vmul.f32 %v1383, %v1398
    %v1452 = vmul.f32 %v1384, %v1398
    %v1453 = vmul.f32 %v1385, %v1398
    %v1454 = vmul.f32 %v1386, %v1398
    %v1455 = vmul.f32 %v1387, %v1398
    %v1456 = vmul.f32 %v1388, %v1398
    %v1457 = vmul.f32 %v1389, %v1398
    %v1458 = vmul.f32 %v1390, %v1398
    %v1459 = vmul.f32 %v1391, %v1398
    %v1460 = vmul.f32 %v1392, %v1398
    %v1461 = vmul.f32 %v1393, %v1398
    %v1462 = vmul.f32 %v1394, %v1398
    %v1463 = vmul.f32 %v1395, %v1398
    %v1464 = vld [vmem:[%s2] sm:$0x1]
    %v1466 = vperm.slane %v1464, 0
    %v1468 = vadd.f32 %v1400, %v1466
    %v1469 = vadd.f32 %v1401, %v1466
    %v1470 = vadd.f32 %v1402, %v1466
    %v1471 = vadd.f32 %v1403, %v1466
    %v1472 = vadd.f32 %v1404, %v1466
    %v1473 = vadd.f32 %v1405, %v1466
    %v1474 = vadd.f32 %v1406, %v1466
    %v1475 = vadd.f32 %v1407, %v1466
    %v1476 = vadd.f32 %v1408, %v1466
    %v1477 = vadd.f32 %v1409, %v1466
    %v1478 = vadd.f32 %v1410, %v1466
    %v1479 = vadd.f32 %v1411, %v1466
    %v1480 = vadd.f32 %v1412, %v1466
    %v1481 = vadd.f32 %v1413, %v1466
    %v1482 = vadd.f32 %v1414, %v1466
    %v1483 = vadd.f32 %v1415, %v1466
    %v1484 = vadd.f32 %v1416, %v1466
    %v1485 = vadd.f32 %v1417, %v1466
    %v1486 = vadd.f32 %v1418, %v1466
    %v1487 = vadd.f32 %v1419, %v1466
    %v1488 = vadd.f32 %v1420, %v1466
    %v1489 = vadd.f32 %v1421, %v1466
    %v1490 = vadd.f32 %v1422, %v1466
    %v1491 = vadd.f32 %v1423, %v1466
    %v1492 = vadd.f32 %v1424, %v1466
    %v1493 = vadd.f32 %v1425, %v1466
    %v1494 = vadd.f32 %v1426, %v1466
    %v1495 = vadd.f32 %v1427, %v1466
    %v1496 = vadd.f32 %v1428, %v1466
    %v1497 = vadd.f32 %v1429, %v1466
    %v1498 = vadd.f32 %v1430, %v1466
    %v1499 = vadd.f32 %v1431, %v1466
    %v1500 = vadd.f32 %v1432, %v1466
    %v1501 = vadd.f32 %v1433, %v1466
    %v1502 = vadd.f32 %v1434, %v1466
    %v1503 = vadd.f32 %v1435, %v1466
    %v1504 = vadd.f32 %v1436, %v1466
    %v1505 = vadd.f32 %v1437, %v1466
    %v1506 = vadd.f32 %v1438, %v1466
    %v1507 = vadd.f32 %v1439, %v1466
    %v1508 = vadd.f32 %v1440, %v1466
    %v1509 = vadd.f32 %v1441, %v1466
    %v1510 = vadd.f32 %v1442, %v1466
    %v1511 = vadd.f32 %v1443, %v1466
    %v1512 = vadd.f32 %v1444, %v1466
    %v1513 = vadd.f32 %v1445, %v1466
    %v1514 = vadd.f32 %v1446, %v1466
    %v1515 = vadd.f32 %v1447, %v1466
    %v1516 = vadd.f32 %v1448, %v1466
    %v1517 = vadd.f32 %v1449, %v1466
    %v1518 = vadd.f32 %v1450, %v1466
    %v1519 = vadd.f32 %v1451, %v1466
    %v1520 = vadd.f32 %v1452, %v1466
    %v1521 = vadd.f32 %v1453, %v1466
    %v1522 = vadd.f32 %v1454, %v1466
    %v1523 = vadd.f32 %v1455, %v1466
    %v1524 = vadd.f32 %v1456, %v1466
    %v1525 = vadd.f32 %v1457, %v1466
    %v1526 = vadd.f32 %v1458, %v1466
    %v1527 = vadd.f32 %v1459, %v1466
    %v1528 = vadd.f32 %v1460, %v1466
    %v1529 = vadd.f32 %v1461, %v1466
    %v1530 = vadd.f32 %v1462, %v1466
    %v1531 = vadd.f32 %v1463, %v1466
    %1532 = vst [vmem:[#allocation7] sm:$0xff] %v1468
    %1533 = vst [vmem:[#allocation7 + $0x8] sm:$0xff] %v1469
    %1534 = vst [vmem:[#allocation7 + $0x10] sm:$0xff] %v1470
    %1535 = vst [vmem:[#allocation7 + $0x18] sm:$0xff] %v1471
    %1536 = vst [vmem:[#allocation7 + $0x20] sm:$0xff] %v1472
    %1537 = vst [vmem:[#allocation7 + $0x28] sm:$0xff] %v1473
    %1538 = vst [vmem:[#allocation7 + $0x30] sm:$0xff] %v1474
    %1539 = vst [vmem:[#allocation7 + $0x38] sm:$0xff] %v1475
    %1540 = vst [vmem:[#allocation7 + $0x40] sm:$0xff] %v1476
    %1541 = vst [vmem:[#allocation7 + $0x48] sm:$0xff] %v1477
    %1542 = vst [vmem:[#allocation7 + $0x50] sm:$0xff] %v1478
    %1543 = vst [vmem:[#allocation7 + $0x58] sm:$0xff] %v1479
    %1544 = vst [vmem:[#allocation7 + $0x60] sm:$0xff] %v1480
    %1545 = vst [vmem:[#allocation7 + $0x68] sm:$0xff] %v1481
    %1546 = vst [vmem:[#allocation7 + $0x70] sm:$0xff] %v1482
    %1547 = vst [vmem:[#allocation7 + $0x78] sm:$0xff] %v1483
    %1548 = vst [vmem:[#allocation7 + $0x80] sm:$0xff] %v1484
    %1549 = vst [vmem:[#allocation7 + $0x88] sm:$0xff] %v1485
    %1550 = vst [vmem:[#allocation7 + $0x90] sm:$0xff] %v1486
    %1551 = vst [vmem:[#allocation7 + $0x98] sm:$0xff] %v1487
    %1552 = vst [vmem:[#allocation7 + $0xa0] sm:$0xff] %v1488
    %1553 = vst [vmem:[#allocation7 + $0xa8] sm:$0xff] %v1489
    %1554 = vst [vmem:[#allocation7 + $0xb0] sm:$0xff] %v1490
    %1555 = vst [vmem:[#allocation7 + $0xb8] sm:$0xff] %v1491
    %1556 = vst [vmem:[#allocation7 + $0xc0] sm:$0xff] %v1492
    %1557 = vst [vmem:[#allocation7 + $0xc8] sm:$0xff] %v1493
    %1558 = vst [vmem:[#allocation7 + $0xd0] sm:$0xff] %v1494
    %1559 = vst [vmem:[#allocation7 + $0xd8] sm:$0xff] %v1495
    %1560 = vst [vmem:[#allocation7 + $0xe0] sm:$0xff] %v1496
    %1561 = vst [vmem:[#allocation7 + $0xe8] sm:$0xff] %v1497
    %1562 = vst [vmem:[#allocation7 + $0xf0] sm:$0xff] %v1498
    %1563 = vst [vmem:[#allocation7 + $0xf8] sm:$0xff] %v1499
    %1564 = vst [vmem:[#allocation7 + $0x100] sm:$0xff] %v1500
    %1565 = vst [vmem:[#allocation7 + $0x108] sm:$0xff] %v1501
    %1566 = vst [vmem:[#allocation7 + $0x110] sm:$0xff] %v1502
    %1567 = vst [vmem:[#allocation7 + $0x118] sm:$0xff] %v1503
    %1568 = vst [vmem:[#allocation7 + $0x120] sm:$0xff] %v1504
    %1569 = vst [vmem:[#allocation7 + $0x128] sm:$0xff] %v1505
    %1570 = vst [vmem:[#allocation7 + $0x130] sm:$0xff] %v1506
    %1571 = vst [vmem:[#allocation7 + $0x138] sm:$0xff] %v1507
    %1572 = vst [vmem:[#allocation7 + $0x140] sm:$0xff] %v1508
    %1573 = vst [vmem:[#allocation7 + $0x148] sm:$0xff] %v1509
    %1574 = vst [vmem:[#allocation7 + $0x150] sm:$0xff] %v1510
    %1575 = vst [vmem:[#allocation7 + $0x158] sm:$0xff] %v1511
    %1576 = vst [vmem:[#allocation7 + $0x160] sm:$0xff] %v1512
    %1577 = vst [vmem:[#allocation7 + $0x168] sm:$0xff] %v1513
    %1578 = vst [vmem:[#allocation7 + $0x170] sm:$0xff] %v1514
    %1579 = vst [vmem:[#allocation7 + $0x178] sm:$0xff] %v1515
    %1580 = vst [vmem:[#allocation7 + $0x180] sm:$0xff] %v1516
    %1581 = vst [vmem:[#allocation7 + $0x188] sm:$0xff] %v1517
    %1582 = vst [vmem:[#allocation7 + $0x190] sm:$0xff] %v1518
    %1583 = vst [vmem:[#allocation7 + $0x198] sm:$0xff] %v1519
    %1584 = vst [vmem:[#allocation7 + $0x1a0] sm:$0xff] %v1520
    %1585 = vst [vmem:[#allocation7 + $0x1a8] sm:$0xff] %v1521
    %1586 = vst [vmem:[#allocation7 + $0x1b0] sm:$0xff] %v1522
    %1587 = vst [vmem:[#allocation7 + $0x1b8] sm:$0xff] %v1523
    %1588 = vst [vmem:[#allocation7 + $0x1c0] sm:$0xff] %v1524
    %1589 = vst [vmem:[#allocation7 + $0x1c8] sm:$0xff] %v1525
    %1590 = vst [vmem:[#allocation7 + $0x1d0] sm:$0xff] %v1526
    %1591 = vst [vmem:[#allocation7 + $0x1d8] sm:$0xff] %v1527
    %1592 = vst [vmem:[#allocation7 + $0x1e0] sm:$0xff] %v1528
    %1593 = vst [vmem:[#allocation7 + $0x1e8] sm:$0xff] %v1529
    %1594 = vst [vmem:[#allocation7 + $0x1f0] sm:$0xff] %v1530
    %1595 = vst [vmem:[#allocation7 + $0x1f8] sm:$0xff] %v1531
    // Predicated region
    $region22: #{tpu_custom_call.1} parent=1 // pred_check
      _
    $region23: #{tpu_custom_call.1} parent=1 // pred_check_branch
      %1597 = sbr.rel (0) target = $region25
    $region24: #{tpu_custom_call.1} parent=1 // pred_region
      %1599 = vsyncadd [#allocation4], 0
      %s1600 = sshll.u32 [#allocation7], 4
      %s1601 = int_to_ptr.vmem [resolvable:$true] %s1600
      %s1602 = sshll.u32 %s3, 4
      %s1603 = int_to_ptr.hbm [resolvable:$true] %s1602
      %1608 = dma.vmem_to_hbm [thread:$0]  %s1601, 8192, %s1603, [#allocation4], 128, 128, 8
    $region25: #{tpu_custom_call.1} parent=1 // pred_fallthru
      _
    // Predicated region
    $region26: #{tpu_custom_call.1} parent=1 // pred_check
      _
    $region27: #{tpu_custom_call.1} parent=1 // pred_check_branch
      %1610 = sbr.rel (0) target = $region29
    $region28: #{tpu_custom_call.1} parent=1 // pred_region
      %1612 = dma.done [#allocation4], 8192
    $region29: #{tpu_custom_call.1} parent=1 // pred_fallthru
      _
    %1613 = vsyncpa [#allocation3], 1
    %1614 = vsyncpa [#allocation6], 1
    %1615 = vsyncpa [#allocation4], 1

</llo_original>
